<compile_context>
chip_gen: v5e
topology: v5e:2x2
jax: 0.10.0
libtpu: 0.0.40
codegen_flags: <defaults>
</compile_context>

<pallas_src>
import jax
import jax.numpy as jnp
from jax.experimental import pallas as pl
from jax.experimental.pallas import tpu as pltpu

LANE = 128  # TPU vreg lane width


def _round_up(a, m):
    return ((a + m - 1) // m) * m


def _make_fm_kernel(K):
    """Kernel closure over the static embedding dim K (for the lane mask)."""

    def fm_kernel(w0_ref, x_ref, tab_ref, out_ref, acc_ref):
        # w0_ref : SMEM (1,) f32            global bias
        # x_ref  : VMEM (tb, F) int32       field indices for this batch tile
        # tab_ref: VMEM (tv, LANE) bf16     packed table chunk:
        #            cols [0:K)  = v,  [K:2K) = v^2,  [2K] = w_lin,  rest 0
        # out_ref: VMEM (1, tb) f32         FM logits, batch along lanes
        # acc_ref: VMEM (tb, LANE) f32      accumulator, resident across vocab axis
        vi = pl.program_id(1)
        nv = pl.num_programs(1)
        tv = tab_ref.shape[0]
        tb, F = x_ref.shape

        @pl.when(vi == 0)
        def _init():
            acc_ref[...] = jnp.zeros_like(acc_ref)

        # Multi-hot counts over this vocab chunk (exact, repeated ids count
        # twice).  Integer accumulator, single cast to bf16 after the loop.
        x = x_ref[...]                                            # (tb, F) int32
        ids = jax.lax.broadcasted_iota(jnp.int32, (1, tv), 1) + vi * tv
        hits = jnp.zeros((tb, tv), jnp.int32)
        for f in range(F):                                        # small static unroll
            hits = hits + (x[:, f:f + 1] == ids).astype(jnp.int32)
        counts = hits.astype(jnp.bfloat16)                        # exact: counts <= F

        # Fused gather + field reduction: one bf16 MXU contraction per chunk.
        #   acc[:, 0:K)   = sum_f v[x[b,f], :]
        #   acc[:, K:2K)  = sum_f v[x[b,f], :]^2
        #   acc[:, 2K]    = sum_f w_lin[x[b,f]]
        acc_ref[...] += jnp.dot(counts, tab_ref[...],
                                preferred_element_type=jnp.float32)

        @pl.when(vi == nv - 1)
        def _finalize():
            res = acc_ref[...]                                    # (tb, LANE) f32
            lane = jax.lax.broadcasted_iota(jnp.int32, (1, LANE), 1)
            c1 = jnp.where(lane < K, 0.5, 0.0)                    # 0.5*(sum_f v)^2
            c2 = jnp.where(lane < K, 0.0,
                           jnp.where(lane < 2 * K, -0.5,          # -0.5*sum_f v^2
                                     jnp.where(lane == 2 * K, 1.0, 0.0)))  # + lin
            y = jnp.sum(c2 * res + c1 * (res * res), axis=-1) + w0_ref[0]
            out_ref[...] = y.reshape(out_ref.shape)

    return fm_kernel


def fm_forward(x, w0, w_lin, v_emb, *, tb=1024, tv=512):
    """x: [B, F] int32 indices into vocab of size V; returns [B] float32 logits."""
    B, F = x.shape
    V, K = v_emb.shape
    assert 2 * K + 1 <= LANE, "packed table needs 2*K+1 <= 128"
    assert tb % LANE == 0 and tv % LANE == 0

    # ---- vocab chunking (reduction axis of the grid) ----
    tv_eff = min(tv, _round_up(V, LANE))
    Vp = _round_up(V, tv_eff)

    # ---- packed bf16 parameter table (single 128-lane group) ----
    v32 = v_emb.astype(jnp.float32)
    tab = jnp.zeros((Vp, LANE), jnp.float32)
    tab = tab.at[:V, 0:K].set(v32)
    tab = tab.at[:V, K:2 * K].set(v32 * v32)
    tab = tab.at[:V, 2 * K].set(w_lin.astype(jnp.float32))
    tab = tab.astype(jnp.bfloat16)

    # ---- batch tiling: >= 2 grid steps when possible (v7x megacore) ----
    if B <= 2 * tb:
        tb_eff = max(LANE, _round_up((B + 1) // 2, LANE))
    else:
        tb_eff = tb
    Bp = _round_up(B, tb_eff)
    x_pad = jnp.pad(x.astype(jnp.int32), ((0, Bp - B), (0, 0)))

    grid = (Bp // tb_eff, Vp // tv_eff)

    # ---- VMEM budget from actual buffer sizes (cap 48 MiB, >= 4 MiB) ----
    vmem_bytes = (
        2 * tb_eff * F * 4            # x tiles (double-buffered)
        + 2 * tv_eff * LANE * 2       # bf16 table chunks (double-buffered)
        + 2 * tb_eff * 4              # output tiles
        + tb_eff * LANE * 4           # f32 accumulator scratch
        + 4 * tb_eff * tv_eff * 4     # counts / compare temporaries
        + 2 * tb_eff * LANE * 4       # matmul result + finalize temporaries
    )
    vmem_limit = max(4 << 20, min(48 << 20, _round_up(2 * vmem_bytes, 1 << 20)))

    cost = pl.CostEstimate(
        flops=2 * Bp * Vp * LANE + Bp * Vp * F + 4 * Bp * LANE,
        transcendentals=0,
        bytes_accessed=Bp * F * 4 + (Bp // tb_eff) * Vp * LANE * 2 + Bp * 4 + 4,
    )

    out = pl.pallas_call(
        _make_fm_kernel(K),
        out_shape=jax.ShapeDtypeStruct((1, Bp), jnp.float32),
        grid=grid,
        in_specs=[
            pl.BlockSpec(memory_space=pltpu.MemorySpace.SMEM),       # w0 scalar
            pl.BlockSpec((tb_eff, F), lambda i, j: (i, 0)),          # index tile
            pl.BlockSpec((tv_eff, LANE), lambda i, j: (j, 0)),       # table chunk
        ],
        out_specs=pl.BlockSpec((1, tb_eff), lambda i, j: (0, i)),    # lane-dense out
        scratch_shapes=[pltpu.VMEM((tb_eff, LANE), jnp.float32)],    # f32 accumulator
        compiler_params=pltpu.CompilerParams(
            dimension_semantics=("parallel", "arbitrary"),
            vmem_limit_bytes=vmem_limit),
        cost_estimate=cost,
    )(w0.astype(jnp.float32), x_pad, tab)
    return out[0, :B]


def fm_reference(x, w0, w_lin, v_emb):
    emb = jnp.take(v_emb, x, axis=0).astype(jnp.float32)
    lin = jnp.take(w_lin, x, axis=0).astype(jnp.float32)
    sum_f = emb.sum(axis=1)
    sum_sq = (emb * emb).sum(axis=1)
    second = 0.5 * (sum_f * sum_f - sum_sq).sum(axis=-1)
    return w0[0] + lin.sum(axis=-1) + second


if __name__ == "__main__":
    def run_case(B, F, V, K, seed, tb, tv):
        key = jax.random.PRNGKey(seed)
        k_x, k_w, k_v, k_b = jax.random.split(key, 4)
        x = jax.random.randint(k_x, (B, F), 0, V, dtype=jnp.int32)
        # Parameters snapped to bf16-representable values; remaining error is the
        # bf16 rounding of the v^2 columns, well inside the tolerance below.
        w_lin = (jax.random.normal(k_w, (V,), jnp.float32) * 0.1
                 ).astype(jnp.bfloat16).astype(jnp.float32)
        v_emb = (jax.random.normal(k_v, (V, K), jnp.float32) * 0.1
                 ).astype(jnp.bfloat16).astype(jnp.float32)
        w0 = jax.random.normal(k_b, (1,), jnp.float32) * 0.1

        out = jax.block_until_ready(fm_forward(x, w0, w_lin, v_emb, tb=tb, tv=tv))
        ref = jax.block_until_ready(fm_reference(x, w0, w_lin, v_emb))
        assert out.shape == (B,)
        assert jnp.allclose(out, ref, atol=3e-3, rtol=3e-3), (out, ref)

    # Case 1: batch padding + a 2-step "parallel" batch grid, single vocab chunk.
    run_case(B=200, F=8, V=64, K=32, seed=0, tb=512, tv=512)
    # Case 2: multi-chunk vocab reduction (accumulator path) + batch tail padding.
    run_case(B=96, F=6, V=300, K=24, seed=1, tb=512, tv=128)

    print("KERNEL_OK")
</pallas_src>

<mosaic_0001>
module attributes {stable_mosaic.version = 11 : i64} {
  func.func @fm_kernel(%arg0: i32, %arg1: i32, %arg2: memref<1xf32, #tpu.memory_space<smem>>, %arg3: memref<128x8xi32, #tpu.memory_space<vmem>>, %arg4: memref<128x128xbf16, #tpu.memory_space<vmem>>, %arg5: memref<1x128xf32, #tpu.memory_space<vmem>>, %arg6: memref<128x128xf32, #tpu.memory_space<vmem>>) attributes {dimension_semantics = [#tpu.dimension_semantics<parallel>, #tpu.dimension_semantics<arbitrary>], iteration_bounds = array<i64: 2, 1>, scalar_prefetch = 0 : i64, scratch_operands = 1 : i64, tpu.core_type = #tpu.core_type<tc>, window_params = [{transform_indices = @transform_0, window_bounds = array<i64: 1>}, {transform_indices = @transform_1, window_bounds = array<i64: 128, 8>}, {transform_indices = @transform_2, window_bounds = array<i64: 128, 128>}, {transform_indices = @transform_3, window_bounds = array<i64: 1, 128>}]} {
    %c0_i32 = arith.constant 0 : i32
    %0 = arith.cmpi eq, %arg1, %c0_i32 : i32
    %1 = arith.extui %0 : i1 to i32
    %c0_i32_0 = arith.constant 0 : i32
    %2 = arith.cmpi ne, %1, %c0_i32_0 : i32
    scf.if %2 {
      %cst_11 = arith.constant 0.000000e+00 : f32
      %66 = vector.broadcast %cst_11 : f32 to vector<128x128xf32>
      %c0_12 = arith.constant 0 : index
      %c0_13 = arith.constant 0 : index
      %67 = vector.load %arg6[%c0_12, %c0_13] : memref<128x128xf32, #tpu.memory_space<vmem>>, vector<128x128xf32>
      tpu.vector_store %arg6[%c0_12, %c0_13], %66 {strides = array<i32>} : memref<128x128xf32, #tpu.memory_space<vmem>>, vector<128x128xf32>,
    } else {
    }
    %c0 = arith.constant 0 : index
    %c0_1 = arith.constant 0 : index
    %3 = vector.load %arg3[%c0, %c0_1] : memref<128x8xi32, #tpu.memory_space<vmem>>, vector<128x8xi32>
    %4 = tpu.iota {dimensions = array<i32: 1>} : vector<1x128xi32>
    %c128_i32 = arith.constant 128 : i32
    %5 = arith.muli %arg1, %c128_i32 : i32
    %6 = vector.broadcast %5 : i32 to vector<1x128xi32>
    %7 = arith.addi %4, %6 : vector<1x128xi32>
    %c0_i32_2 = arith.constant 0 : i32
    %8 = vector.broadcast %c0_i32_2 : i32 to vector<128x128xi32>
    %9 = vector.extract_strided_slice %3 {offsets = [0, 0], sizes = [128, 1], strides = [1, 1]} : vector<128x8xi32> to vector<128x1xi32>
    %10 = vector.broadcast %9 : vector<128x1xi32> to vector<128x128xi32>
    %11 = vector.broadcast %7 : vector<1x128xi32> to vector<128x128xi32>
    %12 = arith.cmpi eq, %10, %11 : vector<128x128xi32>
    %13 = arith.extui %12 : vector<128x128xi1> to vector<128x128xi32>
    %14 = arith.addi %8, %13 : vector<128x128xi32>
    %15 = vector.extract_strided_slice %3 {offsets = [0, 1], sizes = [128, 1], strides = [1, 1]} : vector<128x8xi32> to vector<128x1xi32>
    %16 = vector.broadcast %15 : vector<128x1xi32> to vector<128x128xi32>
    %17 = vector.broadcast %7 : vector<1x128xi32> to vector<128x128xi32>
    %18 = arith.cmpi eq, %16, %17 : vector<128x128xi32>
    %19 = arith.extui %18 : vector<128x128xi1> to vector<128x128xi32>
    %20 = arith.addi %14, %19 : vector<128x128xi32>
    %21 = vector.extract_strided_slice %3 {offsets = [0, 2], sizes = [128, 1], strides = [1, 1]} : vector<128x8xi32> to vector<128x1xi32>
    %22 = vector.broadcast %21 : vector<128x1xi32> to vector<128x128xi32>
    %23 = vector.broadcast %7 : vector<1x128xi32> to vector<128x128xi32>
    %24 = arith.cmpi eq, %22, %23 : vector<128x128xi32>
    %25 = arith.extui %24 : vector<128x128xi1> to vector<128x128xi32>
    %26 = arith.addi %20, %25 : vector<128x128xi32>
    %27 = vector.extract_strided_slice %3 {offsets = [0, 3], sizes = [128, 1], strides = [1, 1]} : vector<128x8xi32> to vector<128x1xi32>
    %28 = vector.broadcast %27 : vector<128x1xi32> to vector<128x128xi32>
    %29 = vector.broadcast %7 : vector<1x128xi32> to vector<128x128xi32>
    %30 = arith.cmpi eq, %28, %29 : vector<128x128xi32>
    %31 = arith.extui %30 : vector<128x128xi1> to vector<128x128xi32>
    %32 = arith.addi %26, %31 : vector<128x128xi32>
    %33 = vector.extract_strided_slice %3 {offsets = [0, 4], sizes = [128, 1], strides = [1, 1]} : vector<128x8xi32> to vector<128x1xi32>
    %34 = vector.broadcast %33 : vector<128x1xi32> to vector<128x128xi32>
    %35 = vector.broadcast %7 : vector<1x128xi32> to vector<128x128xi32>
    %36 = arith.cmpi eq, %34, %35 : vector<128x128xi32>
    %37 = arith.extui %36 : vector<128x128xi1> to vector<128x128xi32>
    %38 = arith.addi %32, %37 : vector<128x128xi32>
    %39 = vector.extract_strided_slice %3 {offsets = [0, 5], sizes = [128, 1], strides = [1, 1]} : vector<128x8xi32> to vector<128x1xi32>
    %40 = vector.broadcast %39 : vector<128x1xi32> to vector<128x128xi32>
    %41 = vector.broadcast %7 : vector<1x128xi32> to vector<128x128xi32>
    %42 = arith.cmpi eq, %40, %41 : vector<128x128xi32>
    %43 = arith.extui %42 : vector<128x128xi1> to vector<128x128xi32>
    %44 = arith.addi %38, %43 : vector<128x128xi32>
    %45 = vector.extract_strided_slice %3 {offsets = [0, 6], sizes = [128, 1], strides = [1, 1]} : vector<128x8xi32> to vector<128x1xi32>
    %46 = vector.broadcast %45 : vector<128x1xi32> to vector<128x128xi32>
    %47 = vector.broadcast %7 : vector<1x128xi32> to vector<128x128xi32>
    %48 = arith.cmpi eq, %46, %47 : vector<128x128xi32>
    %49 = arith.extui %48 : vector<128x128xi1> to vector<128x128xi32>
    %50 = arith.addi %44, %49 : vector<128x128xi32>
    %51 = vector.extract_strided_slice %3 {offsets = [0, 7], sizes = [128, 1], strides = [1, 1]} : vector<128x8xi32> to vector<128x1xi32>
    %52 = vector.broadcast %51 : vector<128x1xi32> to vector<128x128xi32>
    %53 = vector.broadcast %7 : vector<1x128xi32> to vector<128x128xi32>
    %54 = arith.cmpi eq, %52, %53 : vector<128x128xi32>
    %55 = arith.extui %54 : vector<128x128xi1> to vector<128x128xi32>
    %56 = arith.addi %50, %55 : vector<128x128xi32>
    %57 = arith.sitofp %56 : vector<128x128xi32> to vector<128x128xbf16>
    %c0_3 = arith.constant 0 : index
    %c0_4 = arith.constant 0 : index
    %58 = vector.load %arg6[%c0_3, %c0_4] : memref<128x128xf32, #tpu.memory_space<vmem>>, vector<128x128xf32>
    %c0_5 = arith.constant 0 : index
    %c0_6 = arith.constant 0 : index
    %59 = vector.load %arg4[%c0_5, %c0_6] : memref<128x128xbf16, #tpu.memory_space<vmem>>, vector<128x128xbf16>
    %cst = arith.constant dense<0.000000e+00> : vector<128x128xf32>
    %60 = tpu.matmul %57, %59, %cst {dimension_numbers = #tpu.dot_dimension_numbers<[1], [0], [0], [1], [0, 0, 1, 1], [], []>} : vector<128x128xbf16>, vector<128x128xbf16>, vector<128x128xf32> -> vector<128x128xf32>
    %61 = arith.addf %58, %60 : vector<128x128xf32>
    %c0_7 = arith.constant 0 : index
    %c0_8 = arith.constant 0 : index
    %62 = vector.load %arg6[%c0_7, %c0_8] : memref<128x128xf32, #tpu.memory_space<vmem>>, vector<128x128xf32>
    tpu.vector_store %arg6[%c0_7, %c0_8], %61 {strides = array<i32>} : memref<128x128xf32, #tpu.memory_space<vmem>>, vector<128x128xf32>,
    %c0_i32_9 = arith.constant 0 : i32
    %63 = arith.cmpi eq, %arg1, %c0_i32_9 : i32
    %64 = arith.extui %63 : i1 to i32
    %c0_i32_10 = arith.constant 0 : i32
    %65 = arith.cmpi ne, %64, %c0_i32_10 : i32
    scf.if %65 {
      %c0_11 = arith.constant 0 : index
      %c0_12 = arith.constant 0 : index
      %66 = vector.load %arg6[%c0_11, %c0_12] : memref<128x128xf32, #tpu.memory_space<vmem>>, vector<128x128xf32>
      %67 = tpu.iota {dimensions = array<i32: 1>} : vector<1x128xi32>
      %c32_i32 = arith.constant 32 : i32
      %68 = vector.broadcast %c32_i32 : i32 to vector<1x128xi32>
      %69 = arith.cmpi slt, %67, %68 : vector<1x128xi32>
      %cst_13 = arith.constant 5.000000e-01 : f32
      %cst_14 = arith.constant 0.000000e+00 : f32
      %70 = vector.broadcast %cst_13 : f32 to vector<1x128xf32>
      %71 = vector.broadcast %cst_14 : f32 to vector<1x128xf32>
      %72 = arith.select %69, %70, %71 : vector<1x128xi1>, vector<1x128xf32>
      %c32_i32_15 = arith.constant 32 : i32
      %73 = vector.broadcast %c32_i32_15 : i32 to vector<1x128xi32>
      %74 = arith.cmpi slt, %67, %73 : vector<1x128xi32>
      %c64_i32 = arith.constant 64 : i32
      %75 = vector.broadcast %c64_i32 : i32 to vector<1x128xi32>
      %76 = arith.cmpi slt, %67, %75 : vector<1x128xi32>
      %c64_i32_16 = arith.constant 64 : i32
      %77 = vector.broadcast %c64_i32_16 : i32 to vector<1x128xi32>
      %78 = arith.cmpi eq, %67, %77 : vector<1x128xi32>
      %cst_17 = arith.constant 1.000000e+00 : f32
      %cst_18 = arith.constant 0.000000e+00 : f32
      %79 = vector.broadcast %cst_17 : f32 to vector<1x128xf32>
      %80 = vector.broadcast %cst_18 : f32 to vector<1x128xf32>
      %81 = arith.select %78, %79, %80 : vector<1x128xi1>, vector<1x128xf32>
      %cst_19 = arith.constant -5.000000e-01 : f32
      %82 = vector.broadcast %cst_19 : f32 to vector<1x128xf32>
      %83 = arith.select %76, %82, %81 : vector<1x128xi1>, vector<1x128xf32>
      %cst_20 = arith.constant 0.000000e+00 : f32
      %84 = vector.broadcast %cst_20 : f32 to vector<1x128xf32>
      %85 = arith.select %74, %84, %83 : vector<1x128xi1>, vector<1x128xf32>
      %86 = vector.broadcast %85 : vector<1x128xf32> to vector<128x128xf32>
      %87 = arith.mulf %86, %66 : vector<128x128xf32>
      %88 = arith.mulf %66, %66 : vector<128x128xf32>
      %89 = vector.broadcast %72 : vector<1x128xf32> to vector<128x128xf32>
      %90 = arith.mulf %89, %88 : vector<128x128xf32>
      %91 = arith.addf %87, %90 : vector<128x128xf32>
      %cst_21 = arith.constant dense<0.000000e+00> : vector<128xf32>
      %92 = vector.multi_reduction <add>, %91, %cst_21 [1] : vector<128x128xf32> to vector<128xf32>
      %c0_22 = arith.constant 0 : index
      %93 = memref.load %arg2[%c0_22] : memref<1xf32, #tpu.memory_space<smem>>
      %94 = vector.broadcast %93 : f32 to vector<128xf32>
      %95 = arith.addf %92, %94 : vector<128xf32>
      %96 = vector.shape_cast %95 : vector<128xf32> to vector<1x128xf32>
      %c0_23 = arith.constant 0 : index
      %c0_24 = arith.constant 0 : index
      %97 = vector.load %arg5[%c0_23, %c0_24] : memref<1x128xf32, #tpu.memory_space<vmem>>, vector<1x128xf32>
      tpu.vector_store %arg5[%c0_23, %c0_24], %96 {strides = array<i32>} : memref<1x128xf32, #tpu.memory_space<vmem>>, vector<1x128xf32>,
    } else {
    }
    return
  }
  func.func @transform_0(%arg0: i32, %arg1: i32) -> i32 {
    %c0_i32 = arith.constant 0 : i32
    %c0_i32_0 = arith.constant 0 : i32
    return %c0_i32 : i32
  }
  func.func @transform_1(%arg0: i32, %arg1: i32) -> (i32, i32) {
    %c0_i32 = arith.constant 0 : i32
    %c0_i32_0 = arith.constant 0 : i32
    return %arg0, %c0_i32 : i32, i32
  }
  func.func @transform_2(%arg0: i32, %arg1: i32) -> (i32, i32) {
    %c0_i32 = arith.constant 0 : i32
    %c0_i32_0 = arith.constant 0 : i32
    return %arg1, %c0_i32 : i32, i32
  }
  func.func @transform_3(%arg0: i32, %arg1: i32) -> (i32, i32) {
    %c0_i32 = arith.constant 0 : i32
    %c0_i32_0 = arith.constant 0 : i32
    return %c0_i32, %arg0 : i32, i32
  }
}

</mosaic_0001>

<llo_original>
// kernel: tpu_custom_call.1
$region0: #{tpu_custom_call.1}
  #allocation0 [shape = 'u32[]', space=smem, size = 0x4, offset = 0x4, fixed_abs, tag = 'smem constant byte address 0x4 - core index']
  #allocation1 [shape = 'u32[72,128]{1,0:T(1,128)}', space=vmem, size = 0x9000, scoped, tag = 'internal scratch']
  #allocation2 [shape = 'f32[128,128]{1,0:T(8,128)}', space=vmem, size = 0x10000, scoped, tag = 'scratch operand']
  #allocation3 [shape = 'f32[1]{0:T(128)S(6)}', space=smem, size = 0x200, scoped, tag = 'scoped memory for tpu_custom_call.1']
  %s0 = inlined_call_operand.<no memory space> [shape: f32[1], index: 0, kind: input, shape index: {}]
  %s1 = inlined_call_operand.vmem [shape: s32[256,8], index: 1, kind: input, shape index: {}]
  %s2 = inlined_call_operand.vmem [shape: bf16[128,128], index: 2, kind: input, shape index: {}]
  %s3 = inlined_call_operand.hbm [shape: f32[1,256], index: 3, kind: output, shape index: {}]
  %s4 = sld [smem:[#allocation0]]
  $region53: #{tpu_custom_call.1} parent=0
    _
  %s6 = ssub.s32 1, %s4
  %s7 = scalar_select 0, %s6, %s4
  %8 = sst [smem:[#allocation3]] %s0
  $region1: #{tpu_custom_call.1} parent=0
    #allocation4 [shape = 'u8[1024]{0}', space=vmem, size = 0x400, scoped, tag = 'output window, operand 0']
    #allocation5 [shape = 's32[2]{0}', space=sflag, size = 0x8, scoped, tag = 'scoped memory for tpu_custom_call.1']
    %9 = vsyncpa [#allocation5], 0
    %s10 = scalar_lea.sflag [#allocation5], 1
    %11 = vsyncpa %s10, 0
    loop: start=0, step=1, limit=4
    $region2: #{tpu_custom_call.1} parent=1 // loop_pre_header
      _
    $region3: #{tpu_custom_call.1} parent=1 // loop_header
      %s13 = sphi 0, %s17
      %p14 = scmp.ge.s32.totalorder %s13, 4
      %s20 = sphi 0, %s32
      %s21 = sphi 0, %s28
      %s22 = sphi 0, %s20
      %s23 = sphi 0, %s21
      %s24 = sphi 0, %s22
      %s25 = sphi 0, %s23
      %s33 = sphi 0, %s33
      %s35 = sphi 0, %s33
      %s36 = sphi 0, %s35
      %s50 = sphi 0, %s36
      %s56 = sphi 0, %s58
      %s59 = sphi 0, %s56
      %s60 = sphi 0, %s59
      %s76 = sphi 0, %s60
      %s82 = sphi 0, %s84
      %s85 = sphi 0, %s82
      %s86 = sphi 0, %s85
      %s102 = sphi 0, %s86
      %s108 = sphi 0, %s110
      %s111 = sphi 0, %s108
      %s112 = sphi 0, %s111
      %s128 = sphi 0, %s112
    $region4: #{tpu_custom_call.1} parent=1 // loop_header_branch
      %16 = sbr.rel (%p14) target = $region8
    $region5: #{tpu_custom_call.1} parent=1 // loop_body
      %s18 = ssub.s32 %s13, 1
      %s19 = ssub.s32 %s13, 2
      %s26 = sadd.s32 1, %s21
      %p27 = scmp.ge.s32.totalorder %s26, 1
      %s28 = scalar_select %p27, 0, %s26
      %s29 = sadd.s32 1, %s20
      %s30 = scalar_select %p27, %s29, %s20
      %p31 = scmp.ge.s32.totalorder %s30, 2
      %s32 = scalar_select %p31, 0, %s30
      %s34 = sadd.s32 %s33, 1
      %p37 = scmp.eq.s32.totalorder %s13, 1
      %p38 = scmp.ne.s32.totalorder %s33, %s35
      %p39 = scmp.eq.s32.totalorder %s13, 0
      %p40 = por %p38, %p39
      %p41 = scmp.ne.s32.totalorder %s33, %s35
      %p42 = scmp.eq.s32.totalorder %s18, 1
      %p43 = por %p41, %p42
      %p44 = scmp.ne.s32.totalorder %s35, %s36
      %p45 = scmp.eq.s32.totalorder %s18, 0
      %p46 = por %p44, %p45
      %p47 = scmp.ne.s32.totalorder %s35, %s36
      %p48 = scmp.eq.s32.totalorder %s19, 1
      %p49 = por %p47, %p48
      %p51 = scmp.ne.s32.totalorder %s36, %s50
      %p52 = scmp.eq.s32.totalorder %s19, 0
      %p53 = por %p51, %p52
      %s54 = ssub.s32 %s20, %s32
      %p55 = scmp.eq.s32.totalorder %s54, 0
      %s57 = sadd.s32 %s56, 1
      %s58 = scalar_select %p55, %s56, %s57
      %p61 = pneg %p55
      %p62 = scmp.eq.s32.totalorder %s13, 1
      %p63 = por %p61, %p62
      %p64 = scmp.ne.s32.totalorder %s56, %s59
      %p65 = scmp.eq.s32.totalorder %s13, 0
      %p66 = por %p64, %p65
      %p67 = scmp.ne.s32.totalorder %s56, %s59
      %p68 = scmp.eq.s32.totalorder %s18, 1
      %p69 = por %p67, %p68
      %p70 = scmp.ne.s32.totalorder %s59, %s60
      %p71 = scmp.eq.s32.totalorder %s18, 0
      %p72 = por %p70, %p71
      %p73 = scmp.ne.s32.totalorder %s59, %s60
      %p74 = scmp.eq.s32.totalorder %s19, 1
      %p75 = por %p73, %p74
      %p77 = scmp.ne.s32.totalorder %s60, %s76
      %p78 = scmp.eq.s32.totalorder %s19, 0
      %p79 = por %p77, %p78
      %s80 = ssub.s32 %s21, %s28
      %p81 = scmp.eq.s32.totalorder %s80, 0
      %s83 = sadd.s32 %s82, 1
      %s84 = scalar_select %p81, %s82, %s83
      %p87 = pneg %p81
      %p88 = scmp.eq.s32.totalorder %s13, 1
      %p89 = por %p87, %p88
      %p90 = scmp.ne.s32.totalorder %s82, %s85
      %p91 = scmp.eq.s32.totalorder %s13, 0
      %p92 = por %p90, %p91
      %p93 = scmp.ne.s32.totalorder %s82, %s85
      %p94 = scmp.eq.s32.totalorder %s18, 1
      %p95 = por %p93, %p94
      %p96 = scmp.ne.s32.totalorder %s85, %s86
      %p97 = scmp.eq.s32.totalorder %s18, 0
      %p98 = por %p96, %p97
      %p99 = scmp.ne.s32.totalorder %s85, %s86
      %p100 = scmp.eq.s32.totalorder %s19, 1
      %p101 = por %p99, %p100
      %p103 = scmp.ne.s32.totalorder %s86, %s102
      %p104 = scmp.eq.s32.totalorder %s19, 0
      %p105 = por %p103, %p104
      %s106 = ssub.s32 %s20, %s32
      %p107 = scmp.eq.s32.totalorder %s106, 0
      %s109 = sadd.s32 %s108, 1
      %s110 = scalar_select %p107, %s108, %s109
      %p113 = pneg %p107
      %p114 = scmp.eq.s32.totalorder %s13, 1
      %p115 = por %p113, %p114
      %p116 = scmp.ne.s32.totalorder %s108, %s111
      %p117 = scmp.eq.s32.totalorder %s13, 0
      %p118 = por %p116, %p117
      %p119 = scmp.ne.s32.totalorder %s108, %s111
      %p120 = scmp.eq.s32.totalorder %s18, 1
      %p121 = por %p119, %p120
      %p122 = scmp.ne.s32.totalorder %s111, %s112
      %p123 = scmp.eq.s32.totalorder %s18, 0
      %p124 = por %p122, %p123
      %p125 = scmp.ne.s32.totalorder %s111, %s112
      %p126 = scmp.eq.s32.totalorder %s19, 1
      %p127 = por %p125, %p126
      %p129 = scmp.ne.s32.totalorder %s112, %s128
      %p130 = scmp.eq.s32.totalorder %s19, 0
      %p131 = por %p129, %p130
      %p132 = scmp.le.s32.totalorder 1, %s13
      %p133 = scmp.lt.s32.totalorder %s13, 3
      %p134 = pnand %p132, %p133
      %p135 = pneg %p134
      // Predicated region
      $region9: #{tpu_custom_call.1} parent=5 // pred_check
        _
      $region10: #{tpu_custom_call.1} parent=5 // pred_check_branch
        %137 = sbr.rel (%p134) target = $region12
      $region11: #{tpu_custom_call.1} parent=5 // pred_region
        %s138 = ssub.s32 %s13, 1
        // Predicated region
        $region13: #{tpu_custom_call.1} parent=11 // pred_check
          %p139 = pneg %p46
        $region14: #{tpu_custom_call.1} parent=11 // pred_check_branch
          %141 = sbr.rel (%p139) target = $region16
        $region15: #{tpu_custom_call.1} parent=11 // pred_region
          _
        $region16: #{tpu_custom_call.1} parent=11 // pred_fallthru
          _
        // Predicated region
        $region17: #{tpu_custom_call.1} parent=11 // pred_check
          %p142 = pneg %p98
        $region18: #{tpu_custom_call.1} parent=11 // pred_check_branch
          %144 = sbr.rel (%p142) target = $region20
        $region19: #{tpu_custom_call.1} parent=11 // pred_region
          %s145 = smul.u32 16, %s23
          %p146 = scmp.lt.s32.totalorder %s145, 15
          %s147 = scalar_select %p146, %s145, 15
          %s148 = smul.addr %s147, 4
          %s149 = scalar_lea.vmem %s2, %s148
          %s150 = smul.u32 16, %s23
        $region20: #{tpu_custom_call.1} parent=11 // pred_fallthru
          _
      $region12: #{tpu_custom_call.1} parent=5 // pred_fallthru
        _
      %p151 = scmp.lt.s32.totalorder %s13, 2
      // Predicated region
      $region21: #{tpu_custom_call.1} parent=5 // pred_check
        %p152 = pneg %p151
      $region22: #{tpu_custom_call.1} parent=5 // pred_check_branch
        %154 = sbr.rel (%p152) target = $region24
      $region23: #{tpu_custom_call.1} parent=5 // pred_region
        // Predicated region
        $region25: #{tpu_custom_call.1} parent=23 // pred_check
          %p155 = pneg %p66
        $region26: #{tpu_custom_call.1} parent=23 // pred_check_branch
          %157 = sbr.rel (%p155) target = $region28
        $region27: #{tpu_custom_call.1} parent=23 // pred_region
          %s158 = smul.u32 16, %s20
          %p159 = scmp.lt.s32.totalorder %s158, 31
          %s160 = scalar_select %p159, %s158, 31
          %s161 = smul.addr %s160, 8
          %s162 = scalar_lea.vmem %s1, %s161
          %s163 = smul.u32 16, %s20
        $region28: #{tpu_custom_call.1} parent=23 // pred_fallthru
          _
      $region24: #{tpu_custom_call.1} parent=5 // pred_fallthru
        _
      %p164 = scmp.le.s32.totalorder 1, %s13
      %p165 = scmp.lt.s32.totalorder %s13, 3
      %p166 = pnand %p164, %p165
      %p167 = pneg %p166
      // Predicated region
      $region29: #{tpu_custom_call.1} parent=5 // pred_check
        _
      $region30: #{tpu_custom_call.1} parent=5 // pred_check_branch
        %169 = sbr.rel (%p166) target = $region32
      $region31: #{tpu_custom_call.1} parent=5 // pred_region
        %s170 = ssub.s32 %s13, 1
        %p171 = pneg %p46
        %p172 = pneg %p43
        %s173 = smul.u32 16, %s22
        %p174 = scmp.lt.s32.totalorder %s173, 31
        %s175 = scalar_select %p174, %s173, 31
        %s176 = smul.addr %s175, 8
        %s177 = scalar_lea.vmem %s1, %s176
        %p178 = pneg %p72
        %p179 = pneg %p69
        %s180 = smul.u32 16, %s23
        %p181 = scmp.lt.s32.totalorder %s180, 15
        %s182 = scalar_select %p181, %s180, 15
        %s183 = smul.addr %s182, 4
        %s184 = scalar_lea.vmem %s2, %s183
        %p185 = pneg %p98
        %p186 = pneg %p95
        %p187 = pneg %p124
        %p188 = pneg %p121
        %s189 = sand.u32 %s111, 1
        %s190 = scalar_lea.sflag [#allocation5], %s189
        %s191 = sand.u32 %s111, 1
        %s192 = scalar_lea.vmem [#allocation4], %s191
        %s193 = smul.u32 16, %s22
        %p194 = scmp.lt.s32.totalorder %s193, 31
        %s195 = scalar_select %p194, %s193, 31
        %s196 = smul.addr %s195, 8
        %s197 = scalar_lea.vmem %s1, %s196
        %s198 = smul.u32 16, %s22
        %s199 = smul.u32 16, %s23
        %p200 = scmp.lt.s32.totalorder %s199, 15
        %s201 = scalar_select %p200, %s199, 15
        %s202 = smul.addr %s201, 4
        %s203 = scalar_lea.vmem %s2, %s202
        %s204 = smul.u32 16, %s23
        %p205 = scmp.eq.s32.totalorder %s23, 0
        // Predicated region
        $region33: #{tpu_custom_call.1} parent=31 // pred_check
          %p206 = pneg %p205
        $region34: #{tpu_custom_call.1} parent=31 // pred_check_branch
          %208 = sbr.rel (%p206) target = $region36
        $region35: #{tpu_custom_call.1} parent=31 // pred_region
          %209 = vst [vmem:[#allocation2] sm:$0xff] 0.0
          %210 = vst [vmem:[#allocation2 + $0x8] sm:$0xff] 0.0
          %211 = vst [vmem:[#allocation2 + $0x10] sm:$0xff] 0.0
          %212 = vst [vmem:[#allocation2 + $0x18] sm:$0xff] 0.0
          %213 = vst [vmem:[#allocation2 + $0x20] sm:$0xff] 0.0
          %214 = vst [vmem:[#allocation2 + $0x28] sm:$0xff] 0.0
          %215 = vst [vmem:[#allocation2 + $0x30] sm:$0xff] 0.0
          %216 = vst [vmem:[#allocation2 + $0x38] sm:$0xff] 0.0
          %217 = vst [vmem:[#allocation2 + $0x40] sm:$0xff] 0.0
          %218 = vst [vmem:[#allocation2 + $0x48] sm:$0xff] 0.0
          %219 = vst [vmem:[#allocation2 + $0x50] sm:$0xff] 0.0
          %220 = vst [vmem:[#allocation2 + $0x58] sm:$0xff] 0.0
          %221 = vst [vmem:[#allocation2 + $0x60] sm:$0xff] 0.0
          %222 = vst [vmem:[#allocation2 + $0x68] sm:$0xff] 0.0
          %223 = vst [vmem:[#allocation2 + $0x70] sm:$0xff] 0.0
          %224 = vst [vmem:[#allocation2 + $0x78] sm:$0xff] 0.0
        $region36: #{tpu_custom_call.1} parent=31 // pred_fallthru
          _
        %v225 = vld [vmem:[%s197] sm:$0xff]
        %v226 = vld [vmem:[%s197 + $0x8] sm:$0xff]
        %v227 = vld [vmem:[%s197 + $0x10] sm:$0xff]
        %v228 = vld [vmem:[%s197 + $0x18] sm:$0xff]
        %v229 = vld [vmem:[%s197 + $0x20] sm:$0xff]
        %v230 = vld [vmem:[%s197 + $0x28] sm:$0xff]
        %v231 = vld [vmem:[%s197 + $0x30] sm:$0xff]
        %v232 = vld [vmem:[%s197 + $0x38] sm:$0xff]
        %v233 = vld [vmem:[%s197 + $0x40] sm:$0xff]
        %v234 = vld [vmem:[%s197 + $0x48] sm:$0xff]
        %v235 = vld [vmem:[%s197 + $0x50] sm:$0xff]
        %v236 = vld [vmem:[%s197 + $0x58] sm:$0xff]
        %v237 = vld [vmem:[%s197 + $0x60] sm:$0xff]
        %v238 = vld [vmem:[%s197 + $0x68] sm:$0xff]
        %v239 = vld [vmem:[%s197 + $0x70] sm:$0xff]
        %v240 = vld [vmem:[%s197 + $0x78] sm:$0xff]
        %v241 = vlaneseq
        %v242 = vand.u32 %v241, 127
        %s243 = smul.u32 %s23, 128
        %v244 = vstv %s243
        %v245 = vadd.s32 %v242, %v244
        %246 = vset.pattern.permute.xlu0 0
        %247 = vperm.xlu0 %246, %v225
        %v248 = vpop.permute.xlu0 %247
        %249 = vset.pattern.permute.xlu0 0
        %250 = vperm.xlu0 %249, %v226
        %v251 = vpop.permute.xlu0 %250
        %252 = vset.pattern.permute.xlu0 0
        %253 = vperm.xlu0 %252, %v227
        %v254 = vpop.permute.xlu0 %253
        %255 = vset.pattern.permute.xlu0 0
        %256 = vperm.xlu0 %255, %v228
        %v257 = vpop.permute.xlu0 %256
        %258 = vset.pattern.permute.xlu0 0
        %259 = vperm.xlu0 %258, %v229
        %v260 = vpop.permute.xlu0 %259
        %261 = vset.pattern.permute.xlu0 0
        %262 = vperm.xlu0 %261, %v230
        %v263 = vpop.permute.xlu0 %262
        %264 = vset.pattern.permute.xlu0 0
        %265 = vperm.xlu0 %264, %v231
        %v266 = vpop.permute.xlu0 %265
        %267 = vset.pattern.permute.xlu0 0
        %268 = vperm.xlu0 %267, %v232
        %v269 = vpop.permute.xlu0 %268
        %270 = vset.pattern.permute.xlu0 0
        %271 = vperm.xlu0 %270, %v233
        %v272 = vpop.permute.xlu0 %271
        %273 = vset.pattern.permute.xlu0 0
        %274 = vperm.xlu0 %273, %v234
        %v275 = vpop.permute.xlu0 %274
        %276 = vset.pattern.permute.xlu0 0
        %277 = vperm.xlu0 %276, %v235
        %v278 = vpop.permute.xlu0 %277
        %279 = vset.pattern.permute.xlu0 0
        %280 = vperm.xlu0 %279, %v236
        %v281 = vpop.permute.xlu0 %280
        %282 = vset.pattern.permute.xlu0 0
        %283 = vperm.xlu0 %282, %v237
        %v284 = vpop.permute.xlu0 %283
        %285 = vset.pattern.permute.xlu0 0
        %286 = vperm.xlu0 %285, %v238
        %v287 = vpop.permute.xlu0 %286
        %288 = vset.pattern.permute.xlu0 0
        %289 = vperm.xlu0 %288, %v239
        %v290 = vpop.permute.xlu0 %289
        %291 = vset.pattern.permute.xlu0 0
        %292 = vperm.xlu0 %291, %v240
        %v293 = vpop.permute.xlu0 %292
        %vm294 = vcmp.eq.s32.totalorder %v248, %v245
        %vm295 = vcmp.eq.s32.totalorder %v251, %v245
        %vm296 = vcmp.eq.s32.totalorder %v254, %v245
        %vm297 = vcmp.eq.s32.totalorder %v257, %v245
        %vm298 = vcmp.eq.s32.totalorder %v260, %v245
        %vm299 = vcmp.eq.s32.totalorder %v263, %v245
        %vm300 = vcmp.eq.s32.totalorder %v266, %v245
        %vm301 = vcmp.eq.s32.totalorder %v269, %v245
        %vm302 = vcmp.eq.s32.totalorder %v272, %v245
        %vm303 = vcmp.eq.s32.totalorder %v275, %v245
        %vm304 = vcmp.eq.s32.totalorder %v278, %v245
        %vm305 = vcmp.eq.s32.totalorder %v281, %v245
        %vm306 = vcmp.eq.s32.totalorder %v284, %v245
        %vm307 = vcmp.eq.s32.totalorder %v287, %v245
        %vm308 = vcmp.eq.s32.totalorder %v290, %v245
        %vm309 = vcmp.eq.s32.totalorder %v293, %v245
        %v310 = vsel %vm294, 1, 0
        %v311 = vsel %vm295, 1, 0
        %v312 = vsel %vm296, 1, 0
        %v313 = vsel %vm297, 1, 0
        %v314 = vsel %vm298, 1, 0
        %v315 = vsel %vm299, 1, 0
        %v316 = vsel %vm300, 1, 0
        %v317 = vsel %vm301, 1, 0
        %v318 = vsel %vm302, 1, 0
        %v319 = vsel %vm303, 1, 0
        %v320 = vsel %vm304, 1, 0
        %v321 = vsel %vm305, 1, 0
        %v322 = vsel %vm306, 1, 0
        %v323 = vsel %vm307, 1, 0
        %v324 = vsel %vm308, 1, 0
        %v325 = vsel %vm309, 1, 0
        %326 = vset.pattern.permute.xlu0 1
        %327 = vperm.xlu0 %326, %v225
        %v328 = vpop.permute.xlu0 %327
        %329 = vset.pattern.permute.xlu0 1
        %330 = vperm.xlu0 %329, %v226
        %v331 = vpop.permute.xlu0 %330
        %332 = vset.pattern.permute.xlu0 1
        %333 = vperm.xlu0 %332, %v227
        %v334 = vpop.permute.xlu0 %333
        %335 = vset.pattern.permute.xlu0 1
        %336 = vperm.xlu0 %335, %v228
        %v337 = vpop.permute.xlu0 %336
        %338 = vset.pattern.permute.xlu0 1
        %339 = vperm.xlu0 %338, %v229
        %v340 = vpop.permute.xlu0 %339
        %341 = vset.pattern.permute.xlu0 1
        %342 = vperm.xlu0 %341, %v230
        %v343 = vpop.permute.xlu0 %342
        %344 = vset.pattern.permute.xlu0 1
        %345 = vperm.xlu0 %344, %v231
        %v346 = vpop.permute.xlu0 %345
        %347 = vset.pattern.permute.xlu0 1
        %348 = vperm.xlu0 %347, %v232
        %v349 = vpop.permute.xlu0 %348
        %350 = vset.pattern.permute.xlu0 1
        %351 = vperm.xlu0 %350, %v233
        %v352 = vpop.permute.xlu0 %351
        %353 = vset.pattern.permute.xlu0 1
        %354 = vperm.xlu0 %353, %v234
        %v355 = vpop.permute.xlu0 %354
        %356 = vset.pattern.permute.xlu0 1
        %357 = vperm.xlu0 %356, %v235
        %v358 = vpop.permute.xlu0 %357
        %359 = vset.pattern.permute.xlu0 1
        %360 = vperm.xlu0 %359, %v236
        %v361 = vpop.permute.xlu0 %360
        %362 = vset.pattern.permute.xlu0 1
        %363 = vperm.xlu0 %362, %v237
        %v364 = vpop.permute.xlu0 %363
        %365 = vset.pattern.permute.xlu0 1
        %366 = vperm.xlu0 %365, %v238
        %v367 = vpop.permute.xlu0 %366
        %368 = vset.pattern.permute.xlu0 1
        %369 = vperm.xlu0 %368, %v239
        %v370 = vpop.permute.xlu0 %369
        %371 = vset.pattern.permute.xlu0 1
        %372 = vperm.xlu0 %371, %v240
        %v373 = vpop.permute.xlu0 %372
        %vm374 = vcmp.eq.s32.totalorder %v328, %v245
        %vm375 = vcmp.eq.s32.totalorder %v331, %v245
        %vm376 = vcmp.eq.s32.totalorder %v334, %v245
        %vm377 = vcmp.eq.s32.totalorder %v337, %v245
        %vm378 = vcmp.eq.s32.totalorder %v340, %v245
        %vm379 = vcmp.eq.s32.totalorder %v343, %v245
        %vm380 = vcmp.eq.s32.totalorder %v346, %v245
        %vm381 = vcmp.eq.s32.totalorder %v349, %v245
        %vm382 = vcmp.eq.s32.totalorder %v352, %v245
        %vm383 = vcmp.eq.s32.totalorder %v355, %v245
        %vm384 = vcmp.eq.s32.totalorder %v358, %v245
        %vm385 = vcmp.eq.s32.totalorder %v361, %v245
        %vm386 = vcmp.eq.s32.totalorder %v364, %v245
        %vm387 = vcmp.eq.s32.totalorder %v367, %v245
        %vm388 = vcmp.eq.s32.totalorder %v370, %v245
        %vm389 = vcmp.eq.s32.totalorder %v373, %v245
        %v390 = vsel %vm374, 1, 0
        %v391 = vsel %vm375, 1, 0
        %v392 = vsel %vm376, 1, 0
        %v393 = vsel %vm377, 1, 0
        %v394 = vsel %vm378, 1, 0
        %v395 = vsel %vm379, 1, 0
        %v396 = vsel %vm380, 1, 0
        %v397 = vsel %vm381, 1, 0
        %v398 = vsel %vm382, 1, 0
        %v399 = vsel %vm383, 1, 0
        %v400 = vsel %vm384, 1, 0
        %v401 = vsel %vm385, 1, 0
        %v402 = vsel %vm386, 1, 0
        %v403 = vsel %vm387, 1, 0
        %v404 = vsel %vm388, 1, 0
        %v405 = vsel %vm389, 1, 0
        %v406 = vadd.s32 %v310, %v390
        %v407 = vadd.s32 %v311, %v391
        %v408 = vadd.s32 %v312, %v392
        %v409 = vadd.s32 %v313, %v393
        %v410 = vadd.s32 %v314, %v394
        %v411 = vadd.s32 %v315, %v395
        %v412 = vadd.s32 %v316, %v396
        %v413 = vadd.s32 %v317, %v397
        %v414 = vadd.s32 %v318, %v398
        %v415 = vadd.s32 %v319, %v399
        %v416 = vadd.s32 %v320, %v400
        %v417 = vadd.s32 %v321, %v401
        %v418 = vadd.s32 %v322, %v402
        %v419 = vadd.s32 %v323, %v403
        %v420 = vadd.s32 %v324, %v404
        %v421 = vadd.s32 %v325, %v405
        %422 = vset.pattern.permute.xlu0 2
        %423 = vperm.xlu0 %422, %v225
        %v424 = vpop.permute.xlu0 %423
        %425 = vset.pattern.permute.xlu0 2
        %426 = vperm.xlu0 %425, %v226
        %v427 = vpop.permute.xlu0 %426
        %428 = vset.pattern.permute.xlu0 2
        %429 = vperm.xlu0 %428, %v227
        %v430 = vpop.permute.xlu0 %429
        %431 = vset.pattern.permute.xlu0 2
        %432 = vperm.xlu0 %431, %v228
        %v433 = vpop.permute.xlu0 %432
        %434 = vset.pattern.permute.xlu0 2
        %435 = vperm.xlu0 %434, %v229
        %v436 = vpop.permute.xlu0 %435
        %437 = vset.pattern.permute.xlu0 2
        %438 = vperm.xlu0 %437, %v230
        %v439 = vpop.permute.xlu0 %438
        %440 = vset.pattern.permute.xlu0 2
        %441 = vperm.xlu0 %440, %v231
        %v442 = vpop.permute.xlu0 %441
        %443 = vset.pattern.permute.xlu0 2
        %444 = vperm.xlu0 %443, %v232
        %v445 = vpop.permute.xlu0 %444
        %446 = vset.pattern.permute.xlu0 2
        %447 = vperm.xlu0 %446, %v233
        %v448 = vpop.permute.xlu0 %447
        %449 = vset.pattern.permute.xlu0 2
        %450 = vperm.xlu0 %449, %v234
        %v451 = vpop.permute.xlu0 %450
        %452 = vset.pattern.permute.xlu0 2
        %453 = vperm.xlu0 %452, %v235
        %v454 = vpop.permute.xlu0 %453
        %455 = vset.pattern.permute.xlu0 2
        %456 = vperm.xlu0 %455, %v236
        %v457 = vpop.permute.xlu0 %456
        %458 = vset.pattern.permute.xlu0 2
        %459 = vperm.xlu0 %458, %v237
        %v460 = vpop.permute.xlu0 %459
        %461 = vset.pattern.permute.xlu0 2
        %462 = vperm.xlu0 %461, %v238
        %v463 = vpop.permute.xlu0 %462
        %464 = vset.pattern.permute.xlu0 2
        %465 = vperm.xlu0 %464, %v239
        %v466 = vpop.permute.xlu0 %465
        %467 = vset.pattern.permute.xlu0 2
        %468 = vperm.xlu0 %467, %v240
        %v469 = vpop.permute.xlu0 %468
        %vm470 = vcmp.eq.s32.totalorder %v424, %v245
        %vm471 = vcmp.eq.s32.totalorder %v427, %v245
        %vm472 = vcmp.eq.s32.totalorder %v430, %v245
        %vm473 = vcmp.eq.s32.totalorder %v433, %v245
        %vm474 = vcmp.eq.s32.totalorder %v436, %v245
        %vm475 = vcmp.eq.s32.totalorder %v439, %v245
        %vm476 = vcmp.eq.s32.totalorder %v442, %v245
        %vm477 = vcmp.eq.s32.totalorder %v445, %v245
        %vm478 = vcmp.eq.s32.totalorder %v448, %v245
        %vm479 = vcmp.eq.s32.totalorder %v451, %v245
        %vm480 = vcmp.eq.s32.totalorder %v454, %v245
        %vm481 = vcmp.eq.s32.totalorder %v457, %v245
        %vm482 = vcmp.eq.s32.totalorder %v460, %v245
        %vm483 = vcmp.eq.s32.totalorder %v463, %v245
        %vm484 = vcmp.eq.s32.totalorder %v466, %v245
        %vm485 = vcmp.eq.s32.totalorder %v469, %v245
        %v486 = vsel %vm470, 1, 0
        %v487 = vsel %vm471, 1, 0
        %v488 = vsel %vm472, 1, 0
        %v489 = vsel %vm473, 1, 0
        %v490 = vsel %vm474, 1, 0
        %v491 = vsel %vm475, 1, 0
        %v492 = vsel %vm476, 1, 0
        %v493 = vsel %vm477, 1, 0
        %v494 = vsel %vm478, 1, 0
        %v495 = vsel %vm479, 1, 0
        %v496 = vsel %vm480, 1, 0
        %v497 = vsel %vm481, 1, 0
        %v498 = vsel %vm482, 1, 0
        %v499 = vsel %vm483, 1, 0
        %v500 = vsel %vm484, 1, 0
        %v501 = vsel %vm485, 1, 0
        %v502 = vadd.s32 %v406, %v486
        %v503 = vadd.s32 %v407, %v487
        %v504 = vadd.s32 %v408, %v488
        %v505 = vadd.s32 %v409, %v489
        %v506 = vadd.s32 %v410, %v490
        %v507 = vadd.s32 %v411, %v491
        %v508 = vadd.s32 %v412, %v492
        %v509 = vadd.s32 %v413, %v493
        %v510 = vadd.s32 %v414, %v494
        %v511 = vadd.s32 %v415, %v495
        %v512 = vadd.s32 %v416, %v496
        %v513 = vadd.s32 %v417, %v497
        %v514 = vadd.s32 %v418, %v498
        %v515 = vadd.s32 %v419, %v499
        %v516 = vadd.s32 %v420, %v500
        %v517 = vadd.s32 %v421, %v501
        %518 = vset.pattern.permute.xlu0 3
        %519 = vperm.xlu0 %518, %v225
        %v520 = vpop.permute.xlu0 %519
        %521 = vset.pattern.permute.xlu0 3
        %522 = vperm.xlu0 %521, %v226
        %v523 = vpop.permute.xlu0 %522
        %524 = vset.pattern.permute.xlu0 3
        %525 = vperm.xlu0 %524, %v227
        %v526 = vpop.permute.xlu0 %525
        %527 = vset.pattern.permute.xlu0 3
        %528 = vperm.xlu0 %527, %v228
        %v529 = vpop.permute.xlu0 %528
        %530 = vset.pattern.permute.xlu0 3
        %531 = vperm.xlu0 %530, %v229
        %v532 = vpop.permute.xlu0 %531
        %533 = vset.pattern.permute.xlu0 3
        %534 = vperm.xlu0 %533, %v230
        %v535 = vpop.permute.xlu0 %534
        %536 = vset.pattern.permute.xlu0 3
        %537 = vperm.xlu0 %536, %v231
        %v538 = vpop.permute.xlu0 %537
        %539 = vset.pattern.permute.xlu0 3
        %540 = vperm.xlu0 %539, %v232
        %v541 = vpop.permute.xlu0 %540
        %542 = vset.pattern.permute.xlu0 3
        %543 = vperm.xlu0 %542, %v233
        %v544 = vpop.permute.xlu0 %543
        %545 = vset.pattern.permute.xlu0 3
        %546 = vperm.xlu0 %545, %v234
        %v547 = vpop.permute.xlu0 %546
        %548 = vset.pattern.permute.xlu0 3
        %549 = vperm.xlu0 %548, %v235
        %v550 = vpop.permute.xlu0 %549
        %551 = vset.pattern.permute.xlu0 3
        %552 = vperm.xlu0 %551, %v236
        %v553 = vpop.permute.xlu0 %552
        %554 = vset.pattern.permute.xlu0 3
        %555 = vperm.xlu0 %554, %v237
        %v556 = vpop.permute.xlu0 %555
        %557 = vset.pattern.permute.xlu0 3
        %558 = vperm.xlu0 %557, %v238
        %v559 = vpop.permute.xlu0 %558
        %560 = vset.pattern.permute.xlu0 3
        %561 = vperm.xlu0 %560, %v239
        %v562 = vpop.permute.xlu0 %561
        %563 = vset.pattern.permute.xlu0 3
        %564 = vperm.xlu0 %563, %v240
        %v565 = vpop.permute.xlu0 %564
        %vm566 = vcmp.eq.s32.totalorder %v520, %v245
        %vm567 = vcmp.eq.s32.totalorder %v523, %v245
        %vm568 = vcmp.eq.s32.totalorder %v526, %v245
        %vm569 = vcmp.eq.s32.totalorder %v529, %v245
        %vm570 = vcmp.eq.s32.totalorder %v532, %v245
        %vm571 = vcmp.eq.s32.totalorder %v535, %v245
        %vm572 = vcmp.eq.s32.totalorder %v538, %v245
        %vm573 = vcmp.eq.s32.totalorder %v541, %v245
        %vm574 = vcmp.eq.s32.totalorder %v544, %v245
        %vm575 = vcmp.eq.s32.totalorder %v547, %v245
        %vm576 = vcmp.eq.s32.totalorder %v550, %v245
        %vm577 = vcmp.eq.s32.totalorder %v553, %v245
        %vm578 = vcmp.eq.s32.totalorder %v556, %v245
        %vm579 = vcmp.eq.s32.totalorder %v559, %v245
        %vm580 = vcmp.eq.s32.totalorder %v562, %v245
        %vm581 = vcmp.eq.s32.totalorder %v565, %v245
        %v582 = vsel %vm566, 1, 0
        %v583 = vsel %vm567, 1, 0
        %v584 = vsel %vm568, 1, 0
        %v585 = vsel %vm569, 1, 0
        %v586 = vsel %vm570, 1, 0
        %v587 = vsel %vm571, 1, 0
        %v588 = vsel %vm572, 1, 0
        %v589 = vsel %vm573, 1, 0
        %v590 = vsel %vm574, 1, 0
        %v591 = vsel %vm575, 1, 0
        %v592 = vsel %vm576, 1, 0
        %v593 = vsel %vm577, 1, 0
        %v594 = vsel %vm578, 1, 0
        %v595 = vsel %vm579, 1, 0
        %v596 = vsel %vm580, 1, 0
        %v597 = vsel %vm581, 1, 0
        %v598 = vadd.s32 %v502, %v582
        %v599 = vadd.s32 %v503, %v583
        %v600 = vadd.s32 %v504, %v584
        %v601 = vadd.s32 %v505, %v585
        %v602 = vadd.s32 %v506, %v586
        %v603 = vadd.s32 %v507, %v587
        %v604 = vadd.s32 %v508, %v588
        %v605 = vadd.s32 %v509, %v589
        %v606 = vadd.s32 %v510, %v590
        %v607 = vadd.s32 %v511, %v591
        %v608 = vadd.s32 %v512, %v592
        %v609 = vadd.s32 %v513, %v593
        %v610 = vadd.s32 %v514, %v594
        %v611 = vadd.s32 %v515, %v595
        %v612 = vadd.s32 %v516, %v596
        %v613 = vadd.s32 %v517, %v597
        %614 = vset.pattern.permute.xlu0 4
        %615 = vperm.xlu0 %614, %v225
        %v616 = vpop.permute.xlu0 %615
        %617 = vset.pattern.permute.xlu0 4
        %618 = vperm.xlu0 %617, %v226
        %v619 = vpop.permute.xlu0 %618
        %620 = vset.pattern.permute.xlu0 4
        %621 = vperm.xlu0 %620, %v227
        %v622 = vpop.permute.xlu0 %621
        %623 = vset.pattern.permute.xlu0 4
        %624 = vperm.xlu0 %623, %v228
        %v625 = vpop.permute.xlu0 %624
        %626 = vset.pattern.permute.xlu0 4
        %627 = vperm.xlu0 %626, %v229
        %v628 = vpop.permute.xlu0 %627
        %629 = vset.pattern.permute.xlu0 4
        %630 = vperm.xlu0 %629, %v230
        %v631 = vpop.permute.xlu0 %630
        %632 = vset.pattern.permute.xlu0 4
        %633 = vperm.xlu0 %632, %v231
        %v634 = vpop.permute.xlu0 %633
        %635 = vset.pattern.permute.xlu0 4
        %636 = vperm.xlu0 %635, %v232
        %v637 = vpop.permute.xlu0 %636
        %638 = vset.pattern.permute.xlu0 4
        %639 = vperm.xlu0 %638, %v233
        %v640 = vpop.permute.xlu0 %639
        %641 = vset.pattern.permute.xlu0 4
        %642 = vperm.xlu0 %641, %v234
        %v643 = vpop.permute.xlu0 %642
        %644 = vset.pattern.permute.xlu0 4
        %645 = vperm.xlu0 %644, %v235
        %v646 = vpop.permute.xlu0 %645
        %647 = vset.pattern.permute.xlu0 4
        %648 = vperm.xlu0 %647, %v236
        %v649 = vpop.permute.xlu0 %648
        %650 = vset.pattern.permute.xlu0 4
        %651 = vperm.xlu0 %650, %v237
        %v652 = vpop.permute.xlu0 %651
        %653 = vset.pattern.permute.xlu0 4
        %654 = vperm.xlu0 %653, %v238
        %v655 = vpop.permute.xlu0 %654
        %656 = vset.pattern.permute.xlu0 4
        %657 = vperm.xlu0 %656, %v239
        %v658 = vpop.permute.xlu0 %657
        %659 = vset.pattern.permute.xlu0 4
        %660 = vperm.xlu0 %659, %v240
        %v661 = vpop.permute.xlu0 %660
        %vm662 = vcmp.eq.s32.totalorder %v616, %v245
        %vm663 = vcmp.eq.s32.totalorder %v619, %v245
        %vm664 = vcmp.eq.s32.totalorder %v622, %v245
        %vm665 = vcmp.eq.s32.totalorder %v625, %v245
        %vm666 = vcmp.eq.s32.totalorder %v628, %v245
        %vm667 = vcmp.eq.s32.totalorder %v631, %v245
        %vm668 = vcmp.eq.s32.totalorder %v634, %v245
        %vm669 = vcmp.eq.s32.totalorder %v637, %v245
        %vm670 = vcmp.eq.s32.totalorder %v640, %v245
        %vm671 = vcmp.eq.s32.totalorder %v643, %v245
        %vm672 = vcmp.eq.s32.totalorder %v646, %v245
        %vm673 = vcmp.eq.s32.totalorder %v649, %v245
        %vm674 = vcmp.eq.s32.totalorder %v652, %v245
        %vm675 = vcmp.eq.s32.totalorder %v655, %v245
        %vm676 = vcmp.eq.s32.totalorder %v658, %v245
        %vm677 = vcmp.eq.s32.totalorder %v661, %v245
        %v678 = vsel %vm662, 1, 0
        %v679 = vsel %vm663, 1, 0
        %v680 = vsel %vm664, 1, 0
        %v681 = vsel %vm665, 1, 0
        %v682 = vsel %vm666, 1, 0
        %v683 = vsel %vm667, 1, 0
        %v684 = vsel %vm668, 1, 0
        %v685 = vsel %vm669, 1, 0
        %v686 = vsel %vm670, 1, 0
        %v687 = vsel %vm671, 1, 0
        %v688 = vsel %vm672, 1, 0
        %v689 = vsel %vm673, 1, 0
        %v690 = vsel %vm674, 1, 0
        %v691 = vsel %vm675, 1, 0
        %v692 = vsel %vm676, 1, 0
        %v693 = vsel %vm677, 1, 0
        %v694 = vadd.s32 %v598, %v678
        %v695 = vadd.s32 %v599, %v679
        %v696 = vadd.s32 %v600, %v680
        %v697 = vadd.s32 %v601, %v681
        %v698 = vadd.s32 %v602, %v682
        %v699 = vadd.s32 %v603, %v683
        %v700 = vadd.s32 %v604, %v684
        %v701 = vadd.s32 %v605, %v685
        %v702 = vadd.s32 %v606, %v686
        %v703 = vadd.s32 %v607, %v687
        %v704 = vadd.s32 %v608, %v688
        %v705 = vadd.s32 %v609, %v689
        %v706 = vadd.s32 %v610, %v690
        %v707 = vadd.s32 %v611, %v691
        %v708 = vadd.s32 %v612, %v692
        %v709 = vadd.s32 %v613, %v693
        %710 = vset.pattern.permute.xlu0 5
        %711 = vperm.xlu0 %710, %v225
        %v712 = vpop.permute.xlu0 %711
        %713 = vset.pattern.permute.xlu0 5
        %714 = vperm.xlu0 %713, %v226
        %v715 = vpop.permute.xlu0 %714
        %716 = vset.pattern.permute.xlu0 5
        %717 = vperm.xlu0 %716, %v227
        %v718 = vpop.permute.xlu0 %717
        %719 = vset.pattern.permute.xlu0 5
        %720 = vperm.xlu0 %719, %v228
        %v721 = vpop.permute.xlu0 %720
        %722 = vset.pattern.permute.xlu0 5
        %723 = vperm.xlu0 %722, %v229
        %v724 = vpop.permute.xlu0 %723
        %725 = vset.pattern.permute.xlu0 5
        %726 = vperm.xlu0 %725, %v230
        %v727 = vpop.permute.xlu0 %726
        %728 = vset.pattern.permute.xlu0 5
        %729 = vperm.xlu0 %728, %v231
        %v730 = vpop.permute.xlu0 %729
        %731 = vset.pattern.permute.xlu0 5
        %732 = vperm.xlu0 %731, %v232
        %v733 = vpop.permute.xlu0 %732
        %734 = vset.pattern.permute.xlu0 5
        %735 = vperm.xlu0 %734, %v233
        %v736 = vpop.permute.xlu0 %735
        %737 = vset.pattern.permute.xlu0 5
        %738 = vperm.xlu0 %737, %v234
        %v739 = vpop.permute.xlu0 %738
        %740 = vset.pattern.permute.xlu0 5
        %741 = vperm.xlu0 %740, %v235
        %v742 = vpop.permute.xlu0 %741
        %743 = vset.pattern.permute.xlu0 5
        %744 = vperm.xlu0 %743, %v236
        %v745 = vpop.permute.xlu0 %744
        %746 = vset.pattern.permute.xlu0 5
        %747 = vperm.xlu0 %746, %v237
        %v748 = vpop.permute.xlu0 %747
        %749 = vset.pattern.permute.xlu0 5
        %750 = vperm.xlu0 %749, %v238
        %v751 = vpop.permute.xlu0 %750
        %752 = vset.pattern.permute.xlu0 5
        %753 = vperm.xlu0 %752, %v239
        %v754 = vpop.permute.xlu0 %753
        %755 = vset.pattern.permute.xlu0 5
        %756 = vperm.xlu0 %755, %v240
        %v757 = vpop.permute.xlu0 %756
        %vm758 = vcmp.eq.s32.totalorder %v712, %v245
        %vm759 = vcmp.eq.s32.totalorder %v715, %v245
        %vm760 = vcmp.eq.s32.totalorder %v718, %v245
        %vm761 = vcmp.eq.s32.totalorder %v721, %v245
        %vm762 = vcmp.eq.s32.totalorder %v724, %v245
        %vm763 = vcmp.eq.s32.totalorder %v727, %v245
        %vm764 = vcmp.eq.s32.totalorder %v730, %v245
        %vm765 = vcmp.eq.s32.totalorder %v733, %v245
        %vm766 = vcmp.eq.s32.totalorder %v736, %v245
        %vm767 = vcmp.eq.s32.totalorder %v739, %v245
        %vm768 = vcmp.eq.s32.totalorder %v742, %v245
        %vm769 = vcmp.eq.s32.totalorder %v745, %v245
        %vm770 = vcmp.eq.s32.totalorder %v748, %v245
        %vm771 = vcmp.eq.s32.totalorder %v751, %v245
        %vm772 = vcmp.eq.s32.totalorder %v754, %v245
        %vm773 = vcmp.eq.s32.totalorder %v757, %v245
        %v774 = vsel %vm758, 1, 0
        %v775 = vsel %vm759, 1, 0
        %v776 = vsel %vm760, 1, 0
        %v777 = vsel %vm761, 1, 0
        %v778 = vsel %vm762, 1, 0
        %v779 = vsel %vm763, 1, 0
        %v780 = vsel %vm764, 1, 0
        %v781 = vsel %vm765, 1, 0
        %v782 = vsel %vm766, 1, 0
        %v783 = vsel %vm767, 1, 0
        %v784 = vsel %vm768, 1, 0
        %v785 = vsel %vm769, 1, 0
        %v786 = vsel %vm770, 1, 0
        %v787 = vsel %vm771, 1, 0
        %v788 = vsel %vm772, 1, 0
        %v789 = vsel %vm773, 1, 0
        %v790 = vadd.s32 %v694, %v774
        %v791 = vadd.s32 %v695, %v775
        %v792 = vadd.s32 %v696, %v776
        %v793 = vadd.s32 %v697, %v777
        %v794 = vadd.s32 %v698, %v778
        %v795 = vadd.s32 %v699, %v779
        %v796 = vadd.s32 %v700, %v780
        %v797 = vadd.s32 %v701, %v781
        %v798 = vadd.s32 %v702, %v782
        %v799 = vadd.s32 %v703, %v783
        %v800 = vadd.s32 %v704, %v784
        %v801 = vadd.s32 %v705, %v785
        %v802 = vadd.s32 %v706, %v786
        %v803 = vadd.s32 %v707, %v787
        %v804 = vadd.s32 %v708, %v788
        %v805 = vadd.s32 %v709, %v789
        %806 = vset.pattern.permute.xlu0 6
        %807 = vperm.xlu0 %806, %v225
        %v808 = vpop.permute.xlu0 %807
        %809 = vset.pattern.permute.xlu0 6
        %810 = vperm.xlu0 %809, %v226
        %v811 = vpop.permute.xlu0 %810
        %812 = vset.pattern.permute.xlu0 6
        %813 = vperm.xlu0 %812, %v227
        %v814 = vpop.permute.xlu0 %813
        %815 = vset.pattern.permute.xlu0 6
        %816 = vperm.xlu0 %815, %v228
        %v817 = vpop.permute.xlu0 %816
        %818 = vset.pattern.permute.xlu0 6
        %819 = vperm.xlu0 %818, %v229
        %v820 = vpop.permute.xlu0 %819
        %821 = vset.pattern.permute.xlu0 6
        %822 = vperm.xlu0 %821, %v230
        %v823 = vpop.permute.xlu0 %822
        %824 = vset.pattern.permute.xlu0 6
        %825 = vperm.xlu0 %824, %v231
        %v826 = vpop.permute.xlu0 %825
        %827 = vset.pattern.permute.xlu0 6
        %828 = vperm.xlu0 %827, %v232
        %v829 = vpop.permute.xlu0 %828
        %830 = vset.pattern.permute.xlu0 6
        %831 = vperm.xlu0 %830, %v233
        %v832 = vpop.permute.xlu0 %831
        %833 = vset.pattern.permute.xlu0 6
        %834 = vperm.xlu0 %833, %v234
        %v835 = vpop.permute.xlu0 %834
        %836 = vset.pattern.permute.xlu0 6
        %837 = vperm.xlu0 %836, %v235
        %v838 = vpop.permute.xlu0 %837
        %839 = vset.pattern.permute.xlu0 6
        %840 = vperm.xlu0 %839, %v236
        %v841 = vpop.permute.xlu0 %840
        %842 = vset.pattern.permute.xlu0 6
        %843 = vperm.xlu0 %842, %v237
        %v844 = vpop.permute.xlu0 %843
        %845 = vset.pattern.permute.xlu0 6
        %846 = vperm.xlu0 %845, %v238
        %v847 = vpop.permute.xlu0 %846
        %848 = vset.pattern.permute.xlu0 6
        %849 = vperm.xlu0 %848, %v239
        %v850 = vpop.permute.xlu0 %849
        %851 = vset.pattern.permute.xlu0 6
        %852 = vperm.xlu0 %851, %v240
        %v853 = vpop.permute.xlu0 %852
        %vm854 = vcmp.eq.s32.totalorder %v808, %v245
        %vm855 = vcmp.eq.s32.totalorder %v811, %v245
        %vm856 = vcmp.eq.s32.totalorder %v814, %v245
        %vm857 = vcmp.eq.s32.totalorder %v817, %v245
        %vm858 = vcmp.eq.s32.totalorder %v820, %v245
        %vm859 = vcmp.eq.s32.totalorder %v823, %v245
        %vm860 = vcmp.eq.s32.totalorder %v826, %v245
        %vm861 = vcmp.eq.s32.totalorder %v829, %v245
        %vm862 = vcmp.eq.s32.totalorder %v832, %v245
        %vm863 = vcmp.eq.s32.totalorder %v835, %v245
        %vm864 = vcmp.eq.s32.totalorder %v838, %v245
        %vm865 = vcmp.eq.s32.totalorder %v841, %v245
        %vm866 = vcmp.eq.s32.totalorder %v844, %v245
        %vm867 = vcmp.eq.s32.totalorder %v847, %v245
        %vm868 = vcmp.eq.s32.totalorder %v850, %v245
        %vm869 = vcmp.eq.s32.totalorder %v853, %v245
        %v870 = vsel %vm854, 1, 0
        %v871 = vsel %vm855, 1, 0
        %v872 = vsel %vm856, 1, 0
        %v873 = vsel %vm857, 1, 0
        %v874 = vsel %vm858, 1, 0
        %v875 = vsel %vm859, 1, 0
        %v876 = vsel %vm860, 1, 0
        %v877 = vsel %vm861, 1, 0
        %v878 = vsel %vm862, 1, 0
        %v879 = vsel %vm863, 1, 0
        %v880 = vsel %vm864, 1, 0
        %v881 = vsel %vm865, 1, 0
        %v882 = vsel %vm866, 1, 0
        %v883 = vsel %vm867, 1, 0
        %v884 = vsel %vm868, 1, 0
        %v885 = vsel %vm869, 1, 0
        %v886 = vadd.s32 %v790, %v870
        %v887 = vadd.s32 %v791, %v871
        %v888 = vadd.s32 %v792, %v872
        %v889 = vadd.s32 %v793, %v873
        %v890 = vadd.s32 %v794, %v874
        %v891 = vadd.s32 %v795, %v875
        %v892 = vadd.s32 %v796, %v876
        %v893 = vadd.s32 %v797, %v877
        %v894 = vadd.s32 %v798, %v878
        %v895 = vadd.s32 %v799, %v879
        %v896 = vadd.s32 %v800, %v880
        %v897 = vadd.s32 %v801, %v881
        %v898 = vadd.s32 %v802, %v882
        %v899 = vadd.s32 %v803, %v883
        %v900 = vadd.s32 %v804, %v884
        %v901 = vadd.s32 %v805, %v885
        %902 = vset.pattern.permute.xlu0 7
        %903 = vperm.xlu0 %902, %v225
        %v904 = vpop.permute.xlu0 %903
        %905 = vset.pattern.permute.xlu0 7
        %906 = vperm.xlu0 %905, %v226
        %v907 = vpop.permute.xlu0 %906
        %908 = vset.pattern.permute.xlu0 7
        %909 = vperm.xlu0 %908, %v227
        %v910 = vpop.permute.xlu0 %909
        %911 = vset.pattern.permute.xlu0 7
        %912 = vperm.xlu0 %911, %v228
        %v913 = vpop.permute.xlu0 %912
        %914 = vset.pattern.permute.xlu0 7
        %915 = vperm.xlu0 %914, %v229
        %v916 = vpop.permute.xlu0 %915
        %917 = vset.pattern.permute.xlu0 7
        %918 = vperm.xlu0 %917, %v230
        %v919 = vpop.permute.xlu0 %918
        %920 = vset.pattern.permute.xlu0 7
        %921 = vperm.xlu0 %920, %v231
        %v922 = vpop.permute.xlu0 %921
        %923 = vset.pattern.permute.xlu0 7
        %924 = vperm.xlu0 %923, %v232
        %v925 = vpop.permute.xlu0 %924
        %926 = vset.pattern.permute.xlu0 7
        %927 = vperm.xlu0 %926, %v233
        %v928 = vpop.permute.xlu0 %927
        %929 = vset.pattern.permute.xlu0 7
        %930 = vperm.xlu0 %929, %v234
        %v931 = vpop.permute.xlu0 %930
        %932 = vset.pattern.permute.xlu0 7
        %933 = vperm.xlu0 %932, %v235
        %v934 = vpop.permute.xlu0 %933
        %935 = vset.pattern.permute.xlu0 7
        %936 = vperm.xlu0 %935, %v236
        %v937 = vpop.permute.xlu0 %936
        %938 = vset.pattern.permute.xlu0 7
        %939 = vperm.xlu0 %938, %v237
        %v940 = vpop.permute.xlu0 %939
        %941 = vset.pattern.permute.xlu0 7
        %942 = vperm.xlu0 %941, %v238
        %v943 = vpop.permute.xlu0 %942
        %944 = vset.pattern.permute.xlu0 7
        %945 = vperm.xlu0 %944, %v239
        %v946 = vpop.permute.xlu0 %945
        %947 = vset.pattern.permute.xlu0 7
        %948 = vperm.xlu0 %947, %v240
        %v949 = vpop.permute.xlu0 %948
        %vm950 = vcmp.eq.s32.totalorder %v904, %v245
        %vm951 = vcmp.eq.s32.totalorder %v907, %v245
        %vm952 = vcmp.eq.s32.totalorder %v910, %v245
        %vm953 = vcmp.eq.s32.totalorder %v913, %v245
        %vm954 = vcmp.eq.s32.totalorder %v916, %v245
        %vm955 = vcmp.eq.s32.totalorder %v919, %v245
        %vm956 = vcmp.eq.s32.totalorder %v922, %v245
        %vm957 = vcmp.eq.s32.totalorder %v925, %v245
        %vm958 = vcmp.eq.s32.totalorder %v928, %v245
        %vm959 = vcmp.eq.s32.totalorder %v931, %v245
        %vm960 = vcmp.eq.s32.totalorder %v934, %v245
        %vm961 = vcmp.eq.s32.totalorder %v937, %v245
        %vm962 = vcmp.eq.s32.totalorder %v940, %v245
        %vm963 = vcmp.eq.s32.totalorder %v943, %v245
        %vm964 = vcmp.eq.s32.totalorder %v946, %v245
        %vm965 = vcmp.eq.s32.totalorder %v949, %v245
        %v966 = vsel %vm950, 1, 0
        %v967 = vsel %vm951, 1, 0
        %v968 = vsel %vm952, 1, 0
        %v969 = vsel %vm953, 1, 0
        %v970 = vsel %vm954, 1, 0
        %v971 = vsel %vm955, 1, 0
        %v972 = vsel %vm956, 1, 0
        %v973 = vsel %vm957, 1, 0
        %v974 = vsel %vm958, 1, 0
        %v975 = vsel %vm959, 1, 0
        %v976 = vsel %vm960, 1, 0
        %v977 = vsel %vm961, 1, 0
        %v978 = vsel %vm962, 1, 0
        %v979 = vsel %vm963, 1, 0
        %v980 = vsel %vm964, 1, 0
        %v981 = vsel %vm965, 1, 0
        %v982 = vadd.s32 %v886, %v966
        %v983 = vadd.s32 %v887, %v967
        %v984 = vadd.s32 %v888, %v968
        %v985 = vadd.s32 %v889, %v969
        %v986 = vadd.s32 %v890, %v970
        %v987 = vadd.s32 %v891, %v971
        %v988 = vadd.s32 %v892, %v972
        %v989 = vadd.s32 %v893, %v973
        %v990 = vadd.s32 %v894, %v974
        %v991 = vadd.s32 %v895, %v975
        %v992 = vadd.s32 %v896, %v976
        %v993 = vadd.s32 %v897, %v977
        %v994 = vadd.s32 %v898, %v978
        %v995 = vadd.s32 %v899, %v979
        %v996 = vadd.s32 %v900, %v980
        %v997 = vadd.s32 %v901, %v981
        %v998 = vcvt.s32.f32 %v982
        %v999 = vcvt.s32.f32 %v983
        %v1000 = vcvt.s32.f32 %v984
        %v1001 = vcvt.s32.f32 %v985
        %v1002 = vcvt.s32.f32 %v986
        %v1003 = vcvt.s32.f32 %v987
        %v1004 = vcvt.s32.f32 %v988
        %v1005 = vcvt.s32.f32 %v989
        %v1006 = vcvt.s32.f32 %v990
        %v1007 = vcvt.s32.f32 %v991
        %v1008 = vcvt.s32.f32 %v992
        %v1009 = vcvt.s32.f32 %v993
        %v1010 = vcvt.s32.f32 %v994
        %v1011 = vcvt.s32.f32 %v995
        %v1012 = vcvt.s32.f32 %v996
        %v1013 = vcvt.s32.f32 %v997
        %v1014 = vpack.c.bf16 %v999, %v998
        %v1015 = vpack.c.bf16 %v1001, %v1000
        %v1016 = vpack.c.bf16 %v1003, %v1002
        %v1017 = vpack.c.bf16 %v1005, %v1004
        %v1018 = vpack.c.bf16 %v1007, %v1006
        %v1019 = vpack.c.bf16 %v1009, %v1008
        %v1020 = vpack.c.bf16 %v1011, %v1010
        %v1021 = vpack.c.bf16 %v1013, %v1012
        %v1022 = vld [vmem:[#allocation2] sm:$0xff]
        %v1023 = vld [vmem:[#allocation2 + $0x8] sm:$0xff]
        %v1024 = vld [vmem:[#allocation2 + $0x10] sm:$0xff]
        %v1025 = vld [vmem:[#allocation2 + $0x18] sm:$0xff]
        %v1026 = vld [vmem:[#allocation2 + $0x20] sm:$0xff]
        %v1027 = vld [vmem:[#allocation2 + $0x28] sm:$0xff]
        %v1028 = vld [vmem:[#allocation2 + $0x30] sm:$0xff]
        %v1029 = vld [vmem:[#allocation2 + $0x38] sm:$0xff]
        %v1030 = vld [vmem:[#allocation2 + $0x40] sm:$0xff]
        %v1031 = vld [vmem:[#allocation2 + $0x48] sm:$0xff]
        %v1032 = vld [vmem:[#allocation2 + $0x50] sm:$0xff]
        %v1033 = vld [vmem:[#allocation2 + $0x58] sm:$0xff]
        %v1034 = vld [vmem:[#allocation2 + $0x60] sm:$0xff]
        %v1035 = vld [vmem:[#allocation2 + $0x68] sm:$0xff]
        %v1036 = vld [vmem:[#allocation2 + $0x70] sm:$0xff]
        %v1037 = vld [vmem:[#allocation2 + $0x78] sm:$0xff]
        %v1038 = vld [vmem:[%s203] sm:$0xf]
        %v1039 = vld [vmem:[%s203 + $0x4] sm:$0xf]
        %v1040 = vld [vmem:[%s203 + $0x8] sm:$0xf]
        %v1041 = vld [vmem:[%s203 + $0xc] sm:$0xf]
        %v1042 = vld [vmem:[%s203 + $0x10] sm:$0xf]
        %v1043 = vld [vmem:[%s203 + $0x14] sm:$0xf]
        %v1044 = vld [vmem:[%s203 + $0x18] sm:$0xf]
        %v1045 = vld [vmem:[%s203 + $0x1c] sm:$0xf]
        %v1046 = vld [vmem:[%s203 + $0x20] sm:$0xf]
        %v1047 = vld [vmem:[%s203 + $0x24] sm:$0xf]
        %v1048 = vld [vmem:[%s203 + $0x28] sm:$0xf]
        %v1049 = vld [vmem:[%s203 + $0x2c] sm:$0xf]
        %v1050 = vld [vmem:[%s203 + $0x30] sm:$0xf]
        %v1051 = vld [vmem:[%s203 + $0x34] sm:$0xf]
        %v1052 = vld [vmem:[%s203 + $0x38] sm:$0xf]
        %v1053 = vld [vmem:[%s203 + $0x3c] sm:$0xf]
        %v1070 = vunpack.c.l.b16 %v1038
        %v1071 = vunpack.c.l.b16 %v1039
        %v1072 = vunpack.c.l.b16 %v1040
        %v1073 = vunpack.c.l.b16 %v1041
        %v1074 = vunpack.c.l.b16 %v1042
        %v1075 = vunpack.c.l.b16 %v1043
        %v1076 = vunpack.c.l.b16 %v1044
        %v1077 = vunpack.c.l.b16 %v1045
        %v1078 = vunpack.c.l.b16 %v1046
        %v1079 = vunpack.c.l.b16 %v1047
        %v1080 = vunpack.c.l.b16 %v1048
        %v1081 = vunpack.c.l.b16 %v1049
        %v1082 = vunpack.c.l.b16 %v1050
        %v1083 = vunpack.c.l.b16 %v1051
        %v1084 = vunpack.c.l.b16 %v1052
        %v1085 = vunpack.c.l.b16 %v1053
        %v1086 = vpack.c.b16 %v1071, %v1070
        %v1087 = vpack.c.b16 %v1073, %v1072
        %v1088 = vpack.c.b16 %v1075, %v1074
        %v1089 = vpack.c.b16 %v1077, %v1076
        %v1090 = vpack.c.b16 %v1079, %v1078
        %v1091 = vpack.c.b16 %v1081, %v1080
        %v1092 = vpack.c.b16 %v1083, %v1082
        %v1093 = vpack.c.b16 %v1085, %v1084
        %1102 = vmatpush.bf16.msra.mxu0 %v1093
        %1103 = vmatpush.bf16.msra.mxu0 %v1092
        %1104 = vmatpush.bf16.msra.mxu0 %v1091
        %1105 = vmatpush.bf16.msra.mxu0 %v1090
        %1106 = vmatpush.bf16.msra.mxu0 %v1089
        %1107 = vmatpush.bf16.msra.mxu0 %v1088
        %1108 = vmatpush.bf16.msra.mxu0 %v1087
        %1109 = vmatpush.bf16.msra.mxu0 %v1086
        %1110 = vmatmul.bf16.gmra.mxu0 %v1014
        %v1111 = vpop.f32.mrf.mxu0
        %v1112 = vadd.f32 0.0, %v1111
        %v1113 = vpop.f32.mrf.mxu0
        %v1114 = vadd.f32 0.0, %v1113
        %1115 = vmatmul.bf16.gmra.mxu0 %v1015
        %v1116 = vpop.f32.mrf.mxu0
        %v1117 = vadd.f32 0.0, %v1116
        %v1118 = vpop.f32.mrf.mxu0
        %v1119 = vadd.f32 0.0, %v1118
        %1120 = vmatmul.bf16.gmra.mxu0 %v1016
        %v1121 = vpop.f32.mrf.mxu0
        %v1122 = vadd.f32 0.0, %v1121
        %v1123 = vpop.f32.mrf.mxu0
        %v1124 = vadd.f32 0.0, %v1123
        %1125 = vmatmul.bf16.gmra.mxu0 %v1017
        %v1126 = vpop.f32.mrf.mxu0
        %v1127 = vadd.f32 0.0, %v1126
        %v1128 = vpop.f32.mrf.mxu0
        %v1129 = vadd.f32 0.0, %v1128
        %1130 = vmatmul.bf16.gmra.mxu0 %v1018
        %v1131 = vpop.f32.mrf.mxu0
        %v1132 = vadd.f32 0.0, %v1131
        %v1133 = vpop.f32.mrf.mxu0
        %v1134 = vadd.f32 0.0, %v1133
        %1135 = vmatmul.bf16.gmra.mxu0 %v1019
        %v1136 = vpop.f32.mrf.mxu0
        %v1137 = vadd.f32 0.0, %v1136
        %v1138 = vpop.f32.mrf.mxu0
        %v1139 = vadd.f32 0.0, %v1138
        %1140 = vmatmul.bf16.gmra.mxu0 %v1020
        %v1141 = vpop.f32.mrf.mxu0
        %v1142 = vadd.f32 0.0, %v1141
        %v1143 = vpop.f32.mrf.mxu0
        %v1144 = vadd.f32 0.0, %v1143
        %1145 = vmatmul.bf16.gmra.mxu0 %v1021
        %v1146 = vpop.f32.mrf.mxu0
        %v1147 = vadd.f32 0.0, %v1146
        %v1148 = vpop.f32.mrf.mxu0
        %v1149 = vadd.f32 0.0, %v1148
        %1150 = vdwg.mxu0
        %v1151 = vadd.f32 %v1022, %v1112
        %v1152 = vadd.f32 %v1023, %v1114
        %v1153 = vadd.f32 %v1024, %v1117
        %v1154 = vadd.f32 %v1025, %v1119
        %v1155 = vadd.f32 %v1026, %v1122
        %v1156 = vadd.f32 %v1027, %v1124
        %v1157 = vadd.f32 %v1028, %v1127
        %v1158 = vadd.f32 %v1029, %v1129
        %v1159 = vadd.f32 %v1030, %v1132
        %v1160 = vadd.f32 %v1031, %v1134
        %v1161 = vadd.f32 %v1032, %v1137
        %v1162 = vadd.f32 %v1033, %v1139
        %v1163 = vadd.f32 %v1034, %v1142
        %v1164 = vadd.f32 %v1035, %v1144
        %v1165 = vadd.f32 %v1036, %v1147
        %v1166 = vadd.f32 %v1037, %v1149
        %1167 = vst [vmem:[#allocation2] sm:$0xff] %v1151
        %1168 = vst [vmem:[#allocation2 + $0x8] sm:$0xff] %v1152
        %1169 = vst [vmem:[#allocation2 + $0x10] sm:$0xff] %v1153
        %1170 = vst [vmem:[#allocation2 + $0x18] sm:$0xff] %v1154
        %1171 = vst [vmem:[#allocation2 + $0x20] sm:$0xff] %v1155
        %1172 = vst [vmem:[#allocation2 + $0x28] sm:$0xff] %v1156
        %1173 = vst [vmem:[#allocation2 + $0x30] sm:$0xff] %v1157
        %1174 = vst [vmem:[#allocation2 + $0x38] sm:$0xff] %v1158
        %1175 = vst [vmem:[#allocation2 + $0x40] sm:$0xff] %v1159
        %1176 = vst [vmem:[#allocation2 + $0x48] sm:$0xff] %v1160
        %1177 = vst [vmem:[#allocation2 + $0x50] sm:$0xff] %v1161
        %1178 = vst [vmem:[#allocation2 + $0x58] sm:$0xff] %v1162
        %1179 = vst [vmem:[#allocation2 + $0x60] sm:$0xff] %v1163
        %1180 = vst [vmem:[#allocation2 + $0x68] sm:$0xff] %v1164
        %1181 = vst [vmem:[#allocation2 + $0x70] sm:$0xff] %v1165
        %1182 = vst [vmem:[#allocation2 + $0x78] sm:$0xff] %v1166
        // Predicated region
        $region37: #{tpu_custom_call.1} parent=31 // pred_check
          %p1183 = pneg %p205
        $region38: #{tpu_custom_call.1} parent=31 // pred_check_branch
          %1185 = sbr.rel (%p1183) target = $region40
        $region39: #{tpu_custom_call.1} parent=31 // pred_region
          %v1186 = vld [vmem:[#allocation2] sm:$0xff]
          %v1187 = vld [vmem:[#allocation2 + $0x8] sm:$0xff]
          %v1188 = vld [vmem:[#allocation2 + $0x10] sm:$0xff]
          %v1189 = vld [vmem:[#allocation2 + $0x18] sm:$0xff]
          %v1190 = vld [vmem:[#allocation2 + $0x20] sm:$0xff]
          %v1191 = vld [vmem:[#allocation2 + $0x28] sm:$0xff]
          %v1192 = vld [vmem:[#allocation2 + $0x30] sm:$0xff]
          %v1193 = vld [vmem:[#allocation2 + $0x38] sm:$0xff]
          %v1194 = vld [vmem:[#allocation2 + $0x40] sm:$0xff]
          %v1195 = vld [vmem:[#allocation2 + $0x48] sm:$0xff]
          %v1196 = vld [vmem:[#allocation2 + $0x50] sm:$0xff]
          %v1197 = vld [vmem:[#allocation2 + $0x58] sm:$0xff]
          %v1198 = vld [vmem:[#allocation2 + $0x60] sm:$0xff]
          %v1199 = vld [vmem:[#allocation2 + $0x68] sm:$0xff]
          %v1200 = vld [vmem:[#allocation2 + $0x70] sm:$0xff]
          %v1201 = vld [vmem:[#allocation2 + $0x78] sm:$0xff]
          %vm1202 = vcmp.lt.s32.totalorder %v242, 32
          %v1203 = vsel %vm1202, 0.5, 0.0
          %vm1204 = vcmp.lt.s32.totalorder %v242, 64
          %vm1205 = vcmp.eq.s32.totalorder %v242, 64
          %v1206 = vsel %vm1205, 1.0, 0.0
          %v1207 = vsel %vm1204, -0.5, %v1206
          %v1208 = vsel %vm1202, 0.0, %v1207
          %v1209 = vmul.f32 %v1208, %v1186
          %v1210 = vmul.f32 %v1208, %v1187
          %v1211 = vmul.f32 %v1208, %v1188
          %v1212 = vmul.f32 %v1208, %v1189
          %v1213 = vmul.f32 %v1208, %v1190
          %v1214 = vmul.f32 %v1208, %v1191
          %v1215 = vmul.f32 %v1208, %v1192
          %v1216 = vmul.f32 %v1208, %v1193
          %v1217 = vmul.f32 %v1208, %v1194
          %v1218 = vmul.f32 %v1208, %v1195
          %v1219 = vmul.f32 %v1208, %v1196
          %v1220 = vmul.f32 %v1208, %v1197
          %v1221 = vmul.f32 %v1208, %v1198
          %v1222 = vmul.f32 %v1208, %v1199
          %v1223 = vmul.f32 %v1208, %v1200
          %v1224 = vmul.f32 %v1208, %v1201
          %v1225 = vmul.f32 %v1186, %v1186
          %v1226 = vmul.f32 %v1187, %v1187
          %v1227 = vmul.f32 %v1188, %v1188
          %v1228 = vmul.f32 %v1189, %v1189
          %v1229 = vmul.f32 %v1190, %v1190
          %v1230 = vmul.f32 %v1191, %v1191
          %v1231 = vmul.f32 %v1192, %v1192
          %v1232 = vmul.f32 %v1193, %v1193
          %v1233 = vmul.f32 %v1194, %v1194
          %v1234 = vmul.f32 %v1195, %v1195
          %v1235 = vmul.f32 %v1196, %v1196
          %v1236 = vmul.f32 %v1197, %v1197
          %v1237 = vmul.f32 %v1198, %v1198
          %v1238 = vmul.f32 %v1199, %v1199
          %v1239 = vmul.f32 %v1200, %v1200
          %v1240 = vmul.f32 %v1201, %v1201
          %v1241 = vmul.f32 %v1203, %v1225
          %v1242 = vmul.f32 %v1203, %v1226
          %v1243 = vmul.f32 %v1203, %v1227
          %v1244 = vmul.f32 %v1203, %v1228
          %v1245 = vmul.f32 %v1203, %v1229
          %v1246 = vmul.f32 %v1203, %v1230
          %v1247 = vmul.f32 %v1203, %v1231
          %v1248 = vmul.f32 %v1203, %v1232
          %v1249 = vmul.f32 %v1203, %v1233
          %v1250 = vmul.f32 %v1203, %v1234
          %v1251 = vmul.f32 %v1203, %v1235
          %v1252 = vmul.f32 %v1203, %v1236
          %v1253 = vmul.f32 %v1203, %v1237
          %v1254 = vmul.f32 %v1203, %v1238
          %v1255 = vmul.f32 %v1203, %v1239
          %v1256 = vmul.f32 %v1203, %v1240
          %v1257 = vadd.f32 %v1209, %v1241
          %v1258 = vadd.f32 %v1210, %v1242
          %v1259 = vadd.f32 %v1211, %v1243
          %v1260 = vadd.f32 %v1212, %v1244
          %v1261 = vadd.f32 %v1213, %v1245
          %v1262 = vadd.f32 %v1214, %v1246
          %v1263 = vadd.f32 %v1215, %v1247
          %v1264 = vadd.f32 %v1216, %v1248
          %v1265 = vadd.f32 %v1217, %v1249
          %v1266 = vadd.f32 %v1218, %v1250
          %v1267 = vadd.f32 %v1219, %v1251
          %v1268 = vadd.f32 %v1220, %v1252
          %v1269 = vadd.f32 %v1221, %v1253
          %v1270 = vadd.f32 %v1222, %v1254
          %v1271 = vadd.f32 %v1223, %v1255
          %v1272 = vadd.f32 %v1224, %v1256
          %1273 = vadd.xlane.f32.xlu0 %v1257
          %v1274 = vpop.xlane.xlu0 %1273
          %1275 = vadd.xlane.f32.xlu0 %v1258
          %v1276 = vpop.xlane.xlu0 %1275
          %1277 = vadd.xlane.f32.xlu0 %v1259
          %v1278 = vpop.xlane.xlu0 %1277
          %1279 = vadd.xlane.f32.xlu0 %v1260
          %v1280 = vpop.xlane.xlu0 %1279
          %1281 = vadd.xlane.f32.xlu0 %v1261
          %v1282 = vpop.xlane.xlu0 %1281
          %1283 = vadd.xlane.f32.xlu0 %v1262
          %v1284 = vpop.xlane.xlu0 %1283
          %1285 = vadd.xlane.f32.xlu0 %v1263
          %v1286 = vpop.xlane.xlu0 %1285
          %1287 = vadd.xlane.f32.xlu0 %v1264
          %v1288 = vpop.xlane.xlu0 %1287
          %1289 = vadd.xlane.f32.xlu0 %v1265
          %v1290 = vpop.xlane.xlu0 %1289
          %1291 = vadd.xlane.f32.xlu0 %v1266
          %v1292 = vpop.xlane.xlu0 %1291
          %1293 = vadd.xlane.f32.xlu0 %v1267
          %v1294 = vpop.xlane.xlu0 %1293
          %1295 = vadd.xlane.f32.xlu0 %v1268
          %v1296 = vpop.xlane.xlu0 %1295
          %1297 = vadd.xlane.f32.xlu0 %v1269
          %v1298 = vpop.xlane.xlu0 %1297
          %1299 = vadd.xlane.f32.xlu0 %v1270
          %v1300 = vpop.xlane.xlu0 %1299
          %1301 = vadd.xlane.f32.xlu0 %v1271
          %v1302 = vpop.xlane.xlu0 %1301
          %1303 = vadd.xlane.f32.xlu0 %v1272
          %v1304 = vpop.xlane.xlu0 %1303
          %s1305 = sld [smem:[#allocation3]]
          %v1306 = vstv %s1305
          %v1307 = vadd.f32 %v1274, %v1306
          %v1308 = vadd.f32 %v1276, %v1306
          %v1309 = vadd.f32 %v1278, %v1306
          %v1310 = vadd.f32 %v1280, %v1306
          %v1311 = vadd.f32 %v1282, %v1306
          %v1312 = vadd.f32 %v1284, %v1306
          %v1313 = vadd.f32 %v1286, %v1306
          %v1314 = vadd.f32 %v1288, %v1306
          %v1315 = vadd.f32 %v1290, %v1306
          %v1316 = vadd.f32 %v1292, %v1306
          %v1317 = vadd.f32 %v1294, %v1306
          %v1318 = vadd.f32 %v1296, %v1306
          %v1319 = vadd.f32 %v1298, %v1306
          %v1320 = vadd.f32 %v1300, %v1306
          %v1321 = vadd.f32 %v1302, %v1306
          %v1322 = vadd.f32 %v1304, %v1306
          %v1339 = vperm.slane %v1307, %v242
          %v1340 = vadd.s32 %v242, 4294967288
          %v1341 = vperm.slane %v1308, %v1340
          %vm1342 = vcmask 130112
          %v1343 = vsel %vm1342, %v1341, %v1339
          %v1344 = vadd.s32 %v242, 4294967280
          %v1345 = vperm.slane %v1309, %v1344
          %vm1346 = vcmask 195712
          %v1347 = vsel %vm1346, %v1345, %v1343
          %v1348 = vadd.s32 %v242, 4294967272
          %v1349 = vperm.slane %v1310, %v1348
          %vm1350 = vcmask 261312
          %v1351 = vsel %vm1350, %v1349, %v1347
          %v1352 = vadd.s32 %v242, 4294967264
          %v1353 = vperm.slane %v1311, %v1352
          %vm1354 = vcmask 326912
          %v1355 = vsel %vm1354, %v1353, %v1351
          %v1356 = vadd.s32 %v242, 4294967256
          %v1357 = vperm.slane %v1312, %v1356
          %vm1358 = vcmask 392512
          %v1359 = vsel %vm1358, %v1357, %v1355
          %v1360 = vadd.s32 %v242, 4294967248
          %v1361 = vperm.slane %v1313, %v1360
          %vm1362 = vcmask 458112
          %v1363 = vsel %vm1362, %v1361, %v1359
          %v1364 = vadd.s32 %v242, 4294967240
          %v1365 = vperm.slane %v1314, %v1364
          %vm1366 = vcmask 523712
          %v1367 = vsel %vm1366, %v1365, %v1363
          %v1368 = vadd.s32 %v242, 4294967232
          %v1369 = vperm.slane %v1315, %v1368
          %vm1370 = vcmask 589312
          %v1371 = vsel %vm1370, %v1369, %v1367
          %v1372 = vadd.s32 %v242, 4294967224
          %v1373 = vperm.slane %v1316, %v1372
          %vm1374 = vcmask 654912
          %v1375 = vsel %vm1374, %v1373, %v1371
          %v1376 = vadd.s32 %v242, 4294967216
          %v1377 = vperm.slane %v1317, %v1376
          %vm1378 = vcmask 720512
          %v1379 = vsel %vm1378, %v1377, %v1375
          %v1380 = vadd.s32 %v242, 4294967208
          %v1381 = vperm.slane %v1318, %v1380
          %vm1382 = vcmask 786112
          %v1383 = vsel %vm1382, %v1381, %v1379
          %v1384 = vadd.s32 %v242, 4294967200
          %v1385 = vperm.slane %v1319, %v1384
          %vm1386 = vcmask 851712
          %v1387 = vsel %vm1386, %v1385, %v1383
          %v1388 = vadd.s32 %v242, 4294967192
          %v1389 = vperm.slane %v1320, %v1388
          %vm1390 = vcmask 917312
          %v1391 = vsel %vm1390, %v1389, %v1387
          %v1392 = vadd.s32 %v242, 4294967184
          %v1393 = vperm.slane %v1321, %v1392
          %vm1394 = vcmask 982912
          %v1395 = vsel %vm1394, %v1393, %v1391
          %v1396 = vadd.s32 %v242, 4294967176
          %v1397 = vperm.slane %v1322, %v1396
          %vm1398 = vcmask 1048512
          %v1399 = vsel %vm1398, %v1397, %v1395
          %1401 = vst [vmem:[%s192] sm:$0x1] %v1399
        $region40: #{tpu_custom_call.1} parent=31 // pred_fallthru
          _
        %s1402 = sand.u32 %s111, 1
        %s1403 = scalar_lea.sflag [#allocation5], %s1402
        %s1404 = sand.u32 %s111, 1
        %s1405 = scalar_lea.vmem [#allocation4], %s1404
        // Predicated region
        $region41: #{tpu_custom_call.1} parent=31 // pred_check
          %p1406 = pneg %p121
        $region42: #{tpu_custom_call.1} parent=31 // pred_check_branch
          %1408 = sbr.rel (%p1406) target = $region44
        $region43: #{tpu_custom_call.1} parent=31 // pred_region
          %1410 = vsyncadd %s1403, 0
          %s1411 = scalar_lea.hbm %s3, %s22
          %s1413 = sshll.u32 %s1405, 4
          %s1414 = int_to_ptr.vmem [resolvable:$true] %s1413
          %s1415 = sshll.u32 %s1411, 4
          %s1416 = int_to_ptr.hbm [resolvable:$true] %s1415
          %1418 = dma.vmem_to_hbm [thread:$0]  %s1414, 16, %s1416, %s1403
        $region44: #{tpu_custom_call.1} parent=31 // pred_fallthru
          _
      $region32: #{tpu_custom_call.1} parent=5 // pred_fallthru
        _
      %p1419 = scmp.le.s32.totalorder 2, %s13
      // Predicated region
      $region45: #{tpu_custom_call.1} parent=5 // pred_check
        %p1420 = pneg %p1419
      $region46: #{tpu_custom_call.1} parent=5 // pred_check_branch
        %1422 = sbr.rel (%p1420) target = $region48
      $region47: #{tpu_custom_call.1} parent=5 // pred_region
        %s1423 = ssub.s32 %s13, 2
        // Predicated region
        $region49: #{tpu_custom_call.1} parent=47 // pred_check
          %p1424 = pneg %p127
        $region50: #{tpu_custom_call.1} parent=47 // pred_check_branch
          %1426 = sbr.rel (%p1424) target = $region52
        $region51: #{tpu_custom_call.1} parent=47 // pred_region
          %s1427 = sand.u32 %s112, 1
          %s1428 = scalar_lea.sflag [#allocation5], %s1427
          %s1429 = sand.u32 %s112, 1
          %s1430 = scalar_lea.vmem [#allocation4], %s1429
          %1432 = dma.done %s1428, 16
        $region52: #{tpu_custom_call.1} parent=47 // pred_fallthru
          _
      $region48: #{tpu_custom_call.1} parent=5 // pred_fallthru
        _
    $region6: #{tpu_custom_call.1} parent=1 // loop_footer
      %s17 = sadd.s32 1, %s13
    $region7: #{tpu_custom_call.1} parent=1 // loop_footer_branch
      %12 = sbr.rel target = $region3
    $region8: #{tpu_custom_call.1} parent=1 // loop_exit
      _
    %1433 = vsyncpa [#allocation5], 1
    %s1434 = scalar_lea.sflag [#allocation5], 1
    %1435 = vsyncpa %s1434, 1

</llo_original>
